<compile_context>
chip_gen: v5e
topology: v5e:2x2
jax: 0.10.0
libtpu: 0.0.40
codegen_flags: <defaults>
</compile_context>

<pallas_src>
import jax
import jax.numpy as jnp
from jax.experimental import pallas as pl
from jax.experimental.pallas import tpu as pltpu

FEATURE_SIZE = 16
HIDDEN_SIZE = 32
SEQ_LEN = 8

# Fused gate-column layout (each slot is 2H wide = [fwd H | bwd H]):
#   [ i | f | o | g ]  -- sigmoid gates first, tanh gate last.
# PyTorch stores gates in order (i, f, g, o); pick them in (i, f, o, g) order.
_GATE_SRC_ORDER = (0, 1, 3, 2)


def _bilstm_kernel(x_ref, wih_ref, whh_ref, b_ref, h0_ref, c0_ref, out_ref,
                   gx_ref):
    Bt, H2 = h0_ref.shape          # Bt sequences, 2H fused lanes [fwd | bwd]
    H = H2 // 2
    G = 4 * H2                     # 8H fused gate lanes [i|f|o|g]
    T = x_ref.shape[0] // Bt       # x rows are time-major: row = t*Bt + j

    # --- Single fused input projection (both directions, one MXU pass) ------
    # gx row t*Bt+j holds, for sequence j at time t, the fwd AND bwd gate
    # pre-activations (fwd/bwd live in the two halves of each 2H gate slot).
    # Staged in VMEM scratch so it never sits in vregs across the unrolled loop.
    gx_ref[...] = (jnp.dot(x_ref[...], wih_ref[...],
                           preferred_element_type=jnp.float32) + b_ref[...])

    whh = whh_ref[...]             # (2H, 8H) block-diagonal recurrent weight
    h = h0_ref[...]                # (Bt, 2H) = [h_fwd | h_bwd]
    c = c0_ref[...]                # (Bt, 2H)

    # Lane masks (built once, outside the loop): within every 2H gate slot the
    # first H lanes belong to the forward direction.
    lane_g = jax.lax.broadcasted_iota(jnp.int32, (Bt, G), 1)
    fwd_g = (lane_g % H2) < H                      # (Bt, 8H)
    lane_h = jax.lax.broadcasted_iota(jnp.int32, (Bt, H2), 1)
    fwd_h = lane_h < H                             # (Bt, 2H)

    # --- Fully unrolled fused recurrence (T small & static) -----------------
    # Per step: one lane-select splices fwd preacts (time s) with bwd preacts
    # (time T-1-s), ONE (Bt,2H)@(2H,8H) MXU push drives both directions, ONE
    # sigmoid pass over the contiguous [i|f|o] slab, ONE tanh over [g] + tanh(c).
    hs = []
    for s in range(T):
        gf = gx_ref[s * Bt:(s + 1) * Bt, :]            # fwd preacts @ time s
        gb = gx_ref[(T - 1 - s) * Bt:(T - s) * Bt, :]  # bwd preacts @ time T-1-s
        gin = jnp.where(fwd_g, gf, gb)
        g = gin + jnp.dot(h, whh, preferred_element_type=jnp.float32)
        sig = jax.nn.sigmoid(g[:, 0:3 * H2])           # [i | f | o]
        i = sig[:, 0:H2]
        f = sig[:, H2:2 * H2]
        o = sig[:, 2 * H2:3 * H2]
        gg = jnp.tanh(g[:, 3 * H2:4 * H2])             # [g]
        c = f * c + i * gg
        h = o * jnp.tanh(c)
        hs.append(h)                                   # fwd@s | bwd@T-1-s

    # --- One lane-dense store per grid step ----------------------------------
    # Output time t needs [h_fwd(t) | h_bwd(t)]; h_bwd(t) was produced at step
    # T-1-t, so splice with a lane-select, concat to (Bt, T*2H) and store once.
    cols = [jnp.where(fwd_h, hs[t], hs[T - 1 - t]) for t in range(T)]
    out_ref[...] = jnp.concatenate(cols, axis=-1)


def init_encoder_params(key, feature_size, hidden_size):
    """Deterministic synthetic init matching nn.LSTM parameter shapes
    (uniform(-1/sqrt(H), 1/sqrt(H)), like PyTorch). Stored pre-transposed:
    wih_* (F, 4H), whh_* (H, 4H), b_* (1, 4H) with gate order (i, f, g, o)."""
    k = 1.0 / jnp.sqrt(jnp.float32(hidden_size))
    keys = jax.random.split(key, 8)
    u = lambda kk, shape: jax.random.uniform(kk, shape, jnp.float32, -k, k)
    p = {}
    for d, tag in enumerate(["f", "b"]):  # forward / reverse directions
        w_ih = u(keys[4 * d + 0], (4 * hidden_size, feature_size))
        w_hh = u(keys[4 * d + 1], (4 * hidden_size, hidden_size))
        b_ih = u(keys[4 * d + 2], (4 * hidden_size,))
        b_hh = u(keys[4 * d + 3], (4 * hidden_size,))
        p[f"wih_{tag}"] = w_ih.T                       # (F, 4H)
        p[f"whh_{tag}"] = w_hh.T                       # (H, 4H)
        p[f"b_{tag}"] = (b_ih + b_hh)[None, :]         # (1, 4H)
    return p


def fuse_bilstm_params(params, feature_size=FEATURE_SIZE,
                       hidden_size=HIDDEN_SIZE):
    """Fused weights used by the kernel:
       wih (F, 8H)  -- both directions read the same x, so columns are just
                       stacked [fwd | bwd] per gate (no zero blocks, no concat),
       whh (2H, 8H) -- block-diagonal over h = [h_fwd | h_bwd],
       b   (1, 8H);
       columns in [i|f|o|g] gate-major layout, each gate slot = [fwd | bwd]."""
    H = hidden_size
    zH = jnp.zeros((H, H), jnp.float32)
    wih_blocks, whh_blocks, b_blocks = [], [], []
    for src in _GATE_SRC_ORDER:
        sl = slice(src * H, (src + 1) * H)
        wih_blocks.append(jnp.concatenate(
            [params["wih_f"][:, sl], params["wih_b"][:, sl]], axis=1))
        whh_blocks.append(jnp.concatenate([
            jnp.concatenate([params["whh_f"][:, sl], zH], axis=0),
            jnp.concatenate([zH, params["whh_b"][:, sl]], axis=0),
        ], axis=1))
        b_blocks.append(jnp.concatenate(
            [params["b_f"][:, sl], params["b_b"][:, sl]], axis=1))
    return {
        "wih": jnp.concatenate(wih_blocks, axis=1),   # (F, 8H)
        "whh": jnp.concatenate(whh_blocks, axis=1),   # (2H, 8H)
        "b": jnp.concatenate(b_blocks, axis=1),       # (1, 8H)
    }


def bilstm_batched(x, h0, c0, fused, hidden_size=HIDDEN_SIZE, batch_tile=8):
    """x: (B, T, F); h0, c0: (B, 2H) fused as [h_fwd|h_bwd]; -> (B, T, 2H).

    Batch is tiled Bt sequences per grid step so the recurrence matmuls, vregs
    and DMAs are filled; weights stay resident (constant index_maps); output is
    exposed lane-dense as (B, T*2H) and reshaped back here."""
    B, T, F = x.shape
    H = hidden_size
    Bt = min(batch_tile, B)
    nb = pl.cdiv(B, Bt)
    Bp = nb * Bt

    x = x.astype(jnp.float32)
    h0 = h0.astype(jnp.float32)
    c0 = c0.astype(jnp.float32)
    if Bp != B:
        pad = Bp - B
        x = jnp.concatenate([x, jnp.zeros((pad, T, F), jnp.float32)], axis=0)
        h0 = jnp.concatenate([h0, jnp.zeros((pad, 2 * H), jnp.float32)], axis=0)
        c0 = jnp.concatenate([c0, jnp.zeros((pad, 2 * H), jnp.float32)], axis=0)

    # Time-major within each batch tile (row = t*Bt + j): layout plumbing only,
    # lets the kernel slice contiguous (Bt, 8H) sublane groups per timestep.
    x_tm = x.reshape(nb, Bt, T, F).transpose(0, 2, 1, 3).reshape(nb, T * Bt, F)

    out = pl.pallas_call(
        _bilstm_kernel,
        out_shape=jax.ShapeDtypeStruct((Bp, T * 2 * H), jnp.float32),
        grid=(nb,),
        in_specs=[
            pl.BlockSpec((None, T * Bt, F), lambda k: (k, 0, 0)),   # x (time-major tile)
            pl.BlockSpec((F, 8 * H), lambda k: (0, 0)),             # wih (resident)
            pl.BlockSpec((2 * H, 8 * H), lambda k: (0, 0)),         # whh (resident)
            pl.BlockSpec((1, 8 * H), lambda k: (0, 0)),             # bias (resident)
            pl.BlockSpec((Bt, 2 * H), lambda k: (k, 0)),            # h0
            pl.BlockSpec((Bt, 2 * H), lambda k: (k, 0)),            # c0
        ],
        out_specs=pl.BlockSpec((Bt, T * 2 * H), lambda k: (k, 0)),
        scratch_shapes=[pltpu.VMEM((T * Bt, 8 * H), jnp.float32)],   # gx staging
        compiler_params=pltpu.CompilerParams(
            dimension_semantics=("parallel",)),
    )(x_tm, fused["wih"], fused["whh"], fused["b"], h0, c0)

    return out.reshape(Bp, T, 2 * H)[:B]


def encoder_forward(inputs, hidden, fused_params, feature_size=FEATURE_SIZE,
                    hidden_size=HIDDEN_SIZE):
    """Pallas version of Encoder.forward: bidirectional LSTM over
    inputs.view(1, -1, F); returns output (1, T, 2H), batch_first.
    Assumes PyTorch direction ordering [fwd, bwd] on hidden's dim 0."""
    h0, c0 = hidden                                                # (2, 1, H)
    x = inputs.reshape(1, -1, feature_size).astype(jnp.float32)    # (1, T, F)
    h0f = h0.astype(jnp.float32).transpose(1, 0, 2).reshape(1, 2 * hidden_size)
    c0f = c0.astype(jnp.float32).transpose(1, 0, 2).reshape(1, 2 * hidden_size)
    return bilstm_batched(x, h0f, c0f, fused_params, hidden_size)


def _ref_bilstm(inputs, hidden, params, feature_size=FEATURE_SIZE,
                hidden_size=HIDDEN_SIZE):
    """Pure-JAX reference reproducing PyTorch bidirectional LSTM semantics."""
    h0, c0 = hidden
    x = inputs.reshape(-1, feature_size).astype(jnp.float32)
    T = x.shape[0]
    H = hidden_size

    def run(tag, h, c, time_indices):
        wih = params[f"wih_{tag}"]
        whh = params[f"whh_{tag}"]
        b = params[f"b_{tag}"][0]
        outs = [None] * T
        for t in time_indices:
            g = x[t] @ wih + h @ whh + b
            i = jax.nn.sigmoid(g[0:H])
            f = jax.nn.sigmoid(g[H:2 * H])
            gg = jnp.tanh(g[2 * H:3 * H])
            o = jax.nn.sigmoid(g[3 * H:4 * H])
            c = f * c + i * gg
            h = o * jnp.tanh(c)
            outs[t] = h
        return jnp.stack(outs, axis=0)

    out_f = run("f", h0[0, 0], c0[0, 0], list(range(T)))
    out_b = run("b", h0[1, 0], c0[1, 0], list(range(T - 1, -1, -1)))
    return jnp.concatenate([out_f, out_b], axis=-1)[None, :, :]


if __name__ == "__main__":
    key = jax.random.PRNGKey(0)
    k_param, k_inp, k_bx, k_h, k_c = jax.random.split(key, 5)

    params = init_encoder_params(k_param, FEATURE_SIZE, HIDDEN_SIZE)
    fused = fuse_bilstm_params(params)

    # --- Module-equivalent single-sequence path (Encoder.forward) -----------
    inputs = jax.random.normal(k_inp, (SEQ_LEN, FEATURE_SIZE), jnp.float32)
    hidden = (jnp.zeros((2, 1, HIDDEN_SIZE), jnp.float32),   # Encoder.init_hidden()
              jnp.zeros((2, 1, HIDDEN_SIZE), jnp.float32))

    out = jax.block_until_ready(encoder_forward(inputs, hidden, fused))
    assert out.shape == (1, SEQ_LEN, 2 * HIDDEN_SIZE), out.shape
    ref = _ref_bilstm(inputs, hidden, params)
    assert jnp.allclose(out, ref, atol=1e-5, rtol=1e-5), \
        float(jnp.max(jnp.abs(out - ref)))

    # --- Batched path: Bt=8 sequences per grid step, grid=(2,) --------------
    B = 16
    xb = jax.random.normal(k_bx, (B, SEQ_LEN, FEATURE_SIZE), jnp.float32)
    h0b = 0.1 * jax.random.normal(k_h, (B, 2, 1, HIDDEN_SIZE), jnp.float32)
    c0b = 0.1 * jax.random.normal(k_c, (B, 2, 1, HIDDEN_SIZE), jnp.float32)
    outb = jax.block_until_ready(
        bilstm_batched(xb,
                       h0b.reshape(B, 2 * HIDDEN_SIZE),
                       c0b.reshape(B, 2 * HIDDEN_SIZE),
                       fused))
    assert outb.shape == (B, SEQ_LEN, 2 * HIDDEN_SIZE), outb.shape

    ref_fn = jax.jit(jax.vmap(
        lambda xs, hs, cs: _ref_bilstm(xs, (hs, cs), params)[0]))
    refb = jax.block_until_ready(ref_fn(xb, h0b, c0b))
    assert jnp.allclose(outb, refb, atol=1e-5, rtol=1e-5), \
        float(jnp.max(jnp.abs(outb - refb)))

    print("KERNEL_OK")
</pallas_src>

<mosaic_0001>
module attributes {stable_mosaic.version = 11 : i64} {
  func.func @_bilstm_kernel(%arg0: i32, %arg1: memref<1x8x16xf32, #tpu.memory_space<vmem>>, %arg2: memref<16x256xf32, #tpu.memory_space<vmem>>, %arg3: memref<64x256xf32, #tpu.memory_space<vmem>>, %arg4: memref<1x256xf32, #tpu.memory_space<vmem>>, %arg5: memref<1x64xf32, #tpu.memory_space<vmem>>, %arg6: memref<1x64xf32, #tpu.memory_space<vmem>>, %arg7: memref<1x512xf32, #tpu.memory_space<vmem>>, %arg8: memref<8x256xf32, #tpu.memory_space<vmem>>) attributes {dimension_semantics = [#tpu.dimension_semantics<parallel>], iteration_bounds = array<i64: 1>, scalar_prefetch = 0 : i64, scratch_operands = 1 : i64, tpu.core_type = #tpu.core_type<tc>, window_params = [{transform_indices = @transform_0, window_bounds = array<i64: 1, 8, 16>}, {pipeline_mode = #tpu.pipeline_mode<synchronous>, transform_indices = @transform_1, window_bounds = array<i64: 16, 256>}, {pipeline_mode = #tpu.pipeline_mode<synchronous>, transform_indices = @transform_2, window_bounds = array<i64: 64, 256>}, {pipeline_mode = #tpu.pipeline_mode<synchronous>, transform_indices = @transform_3, window_bounds = array<i64: 1, 256>}, {transform_indices = @transform_4, window_bounds = array<i64: 1, 64>}, {transform_indices = @transform_5, window_bounds = array<i64: 1, 64>}, {transform_indices = @transform_6, window_bounds = array<i64: 1, 512>}]} {
    %c0 = arith.constant 0 : index
    %c0_0 = arith.constant 0 : index
    %c0_1 = arith.constant 0 : index
    %0 = vector.load %arg1[%c0, %c0_0, %c0_1] : memref<1x8x16xf32, #tpu.memory_space<vmem>>, vector<1x8x16xf32>
    %1 = vector.shape_cast %0 : vector<1x8x16xf32> to vector<8x16xf32>
    %c0_2 = arith.constant 0 : index
    %c0_3 = arith.constant 0 : index
    %2 = vector.load %arg2[%c0_2, %c0_3] : memref<16x256xf32, #tpu.memory_space<vmem>>, vector<16x256xf32>
    %cst = arith.constant dense<0.000000e+00> : vector<8x256xf32>
    %3 = tpu.matmul %1, %2, %cst {dimension_numbers = #tpu.dot_dimension_numbers<[1], [0], [0], [1], [0, 0, 1, 1], [], []>} : vector<8x16xf32>, vector<16x256xf32>, vector<8x256xf32> -> vector<8x256xf32>
    %c0_4 = arith.constant 0 : index
    %c0_5 = arith.constant 0 : index
    %4 = vector.load %arg4[%c0_4, %c0_5] : memref<1x256xf32, #tpu.memory_space<vmem>>, vector<1x256xf32>
    %5 = vector.broadcast %4 : vector<1x256xf32> to vector<8x256xf32>
    %6 = arith.addf %3, %5 : vector<8x256xf32>
    %c0_6 = arith.constant 0 : index
    %c0_7 = arith.constant 0 : index
    %7 = vector.load %arg8[%c0_6, %c0_7] : memref<8x256xf32, #tpu.memory_space<vmem>>, vector<8x256xf32>
    tpu.vector_store %arg8[%c0_6, %c0_7], %6 {strides = array<i32>} : memref<8x256xf32, #tpu.memory_space<vmem>>, vector<8x256xf32>,
    %c0_8 = arith.constant 0 : index
    %c0_9 = arith.constant 0 : index
    %8 = vector.load %arg3[%c0_8, %c0_9] : memref<64x256xf32, #tpu.memory_space<vmem>>, vector<64x256xf32>
    %c0_10 = arith.constant 0 : index
    %c0_11 = arith.constant 0 : index
    %9 = vector.load %arg5[%c0_10, %c0_11] : memref<1x64xf32, #tpu.memory_space<vmem>>, vector<1x64xf32>
    %c0_12 = arith.constant 0 : index
    %c0_13 = arith.constant 0 : index
    %10 = vector.load %arg6[%c0_12, %c0_13] : memref<1x64xf32, #tpu.memory_space<vmem>>, vector<1x64xf32>
    %11 = tpu.iota {dimensions = array<i32: 1>} : vector<1x256xi32>
    %c64_i32 = arith.constant 64 : i32
    %c0_i32 = arith.constant 0 : i32
    %12 = arith.cmpi eq, %c64_i32, %c0_i32 : i32
    %c1_i32 = arith.constant 1 : i32
    %13 = arith.select %12, %c1_i32, %c64_i32 : i32
    %14 = vector.broadcast %13 : i32 to vector<1x256xi32>
    %15 = arith.remsi %11, %14 : vector<1x256xi32>
    %c0_i32_14 = arith.constant 0 : i32
    %16 = vector.broadcast %c0_i32_14 : i32 to vector<1x256xi32>
    %17 = arith.cmpi ne, %15, %16 : vector<1x256xi32>
    %c0_i32_15 = arith.constant 0 : i32
    %18 = vector.broadcast %c0_i32_15 : i32 to vector<1x256xi32>
    %19 = arith.cmpi slt, %15, %18 : vector<1x256xi32>
    %c0_i32_16 = arith.constant 0 : i32
    %20 = arith.cmpi slt, %13, %c0_i32_16 : i32
    %21 = vector.broadcast %20 : i1 to vector<1x256xi1>
    %22 = vector.broadcast %21 : vector<1x256xi1> to vector<1x256xi1>
    %23 = arith.xori %19, %22 : vector<1x256xi1>
    %24 = arith.andi %23, %17 : vector<1x256xi1>
    %25 = vector.broadcast %13 : i32 to vector<1x256xi32>
    %26 = arith.addi %15, %25 : vector<1x256xi32>
    %27 = arith.select %24, %26, %15 : vector<1x256xi1>, vector<1x256xi32>
    %c32_i32 = arith.constant 32 : i32
    %28 = vector.broadcast %c32_i32 : i32 to vector<1x256xi32>
    %29 = arith.cmpi slt, %27, %28 : vector<1x256xi32>
    %30 = tpu.iota {dimensions = array<i32: 1>} : vector<1x64xi32>
    %c32_i32_17 = arith.constant 32 : i32
    %31 = vector.broadcast %c32_i32_17 : i32 to vector<1x64xi32>
    %32 = arith.cmpi slt, %30, %31 : vector<1x64xi32>
    %c0_18 = arith.constant 0 : index
    %c0_19 = arith.constant 0 : index
    %33 = vector.load %arg8[%c0_18, %c0_19] : memref<8x256xf32, #tpu.memory_space<vmem>>, vector<1x256xf32>
    %c7 = arith.constant 7 : index
    %c0_20 = arith.constant 0 : index
    %34 = vector.load %arg8[%c7, %c0_20] : memref<8x256xf32, #tpu.memory_space<vmem>>, vector<1x256xf32>
    %35 = arith.select %29, %33, %34 : vector<1x256xi1>, vector<1x256xf32>
    %cst_21 = arith.constant dense<0.000000e+00> : vector<1x256xf32>
    %36 = tpu.matmul %9, %8, %cst_21 {dimension_numbers = #tpu.dot_dimension_numbers<[1], [0], [0], [1], [0, 0, 1, 1], [], []>} : vector<1x64xf32>, vector<64x256xf32>, vector<1x256xf32> -> vector<1x256xf32>
    %37 = arith.addf %35, %36 : vector<1x256xf32>
    %38 = vector.extract_strided_slice %37 {offsets = [0, 0], sizes = [1, 192], strides = [1, 1]} : vector<1x256xf32> to vector<1x192xf32>
    %39 = arith.negf %38 : vector<1x192xf32>
    %40 = math.exp %39 : vector<1x192xf32>
    %cst_22 = arith.constant 1.000000e+00 : f32
    %41 = vector.broadcast %cst_22 : f32 to vector<1x192xf32>
    %42 = arith.addf %41, %40 : vector<1x192xf32>
    %43 = arith.divf %41, %42 : vector<1x192xf32>
    %44 = vector.extract_strided_slice %43 {offsets = [0, 0], sizes = [1, 64], strides = [1, 1]} : vector<1x192xf32> to vector<1x64xf32>
    %45 = vector.extract_strided_slice %43 {offsets = [0, 64], sizes = [1, 64], strides = [1, 1]} : vector<1x192xf32> to vector<1x64xf32>
    %46 = vector.extract_strided_slice %43 {offsets = [0, 128], sizes = [1, 64], strides = [1, 1]} : vector<1x192xf32> to vector<1x64xf32>
    %47 = vector.extract_strided_slice %37 {offsets = [0, 192], sizes = [1, 64], strides = [1, 1]} : vector<1x256xf32> to vector<1x64xf32>
    %48 = math.tanh %47 : vector<1x64xf32>
    %49 = arith.mulf %45, %10 : vector<1x64xf32>
    %50 = arith.mulf %44, %48 : vector<1x64xf32>
    %51 = arith.addf %49, %50 : vector<1x64xf32>
    %52 = math.tanh %51 : vector<1x64xf32>
    %53 = arith.mulf %46, %52 : vector<1x64xf32>
    %c1 = arith.constant 1 : index
    %c0_23 = arith.constant 0 : index
    %54 = vector.load %arg8[%c1, %c0_23] : memref<8x256xf32, #tpu.memory_space<vmem>>, vector<1x256xf32>
    %c6 = arith.constant 6 : index
    %c0_24 = arith.constant 0 : index
    %55 = vector.load %arg8[%c6, %c0_24] : memref<8x256xf32, #tpu.memory_space<vmem>>, vector<1x256xf32>
    %56 = arith.select %29, %54, %55 : vector<1x256xi1>, vector<1x256xf32>
    %cst_25 = arith.constant dense<0.000000e+00> : vector<1x256xf32>
    %57 = tpu.matmul %53, %8, %cst_25 {dimension_numbers = #tpu.dot_dimension_numbers<[1], [0], [0], [1], [0, 0, 1, 1], [], []>} : vector<1x64xf32>, vector<64x256xf32>, vector<1x256xf32> -> vector<1x256xf32>
    %58 = arith.addf %56, %57 : vector<1x256xf32>
    %59 = vector.extract_strided_slice %58 {offsets = [0, 0], sizes = [1, 192], strides = [1, 1]} : vector<1x256xf32> to vector<1x192xf32>
    %60 = arith.negf %59 : vector<1x192xf32>
    %61 = math.exp %60 : vector<1x192xf32>
    %cst_26 = arith.constant 1.000000e+00 : f32
    %62 = vector.broadcast %cst_26 : f32 to vector<1x192xf32>
    %63 = arith.addf %62, %61 : vector<1x192xf32>
    %64 = arith.divf %62, %63 : vector<1x192xf32>
    %65 = vector.extract_strided_slice %64 {offsets = [0, 0], sizes = [1, 64], strides = [1, 1]} : vector<1x192xf32> to vector<1x64xf32>
    %66 = vector.extract_strided_slice %64 {offsets = [0, 64], sizes = [1, 64], strides = [1, 1]} : vector<1x192xf32> to vector<1x64xf32>
    %67 = vector.extract_strided_slice %64 {offsets = [0, 128], sizes = [1, 64], strides = [1, 1]} : vector<1x192xf32> to vector<1x64xf32>
    %68 = vector.extract_strided_slice %58 {offsets = [0, 192], sizes = [1, 64], strides = [1, 1]} : vector<1x256xf32> to vector<1x64xf32>
    %69 = math.tanh %68 : vector<1x64xf32>
    %70 = arith.mulf %66, %51 : vector<1x64xf32>
    %71 = arith.mulf %65, %69 : vector<1x64xf32>
    %72 = arith.addf %70, %71 : vector<1x64xf32>
    %73 = math.tanh %72 : vector<1x64xf32>
    %74 = arith.mulf %67, %73 : vector<1x64xf32>
    %c2 = arith.constant 2 : index
    %c0_27 = arith.constant 0 : index
    %75 = vector.load %arg8[%c2, %c0_27] : memref<8x256xf32, #tpu.memory_space<vmem>>, vector<1x256xf32>
    %c5 = arith.constant 5 : index
    %c0_28 = arith.constant 0 : index
    %76 = vector.load %arg8[%c5, %c0_28] : memref<8x256xf32, #tpu.memory_space<vmem>>, vector<1x256xf32>
    %77 = arith.select %29, %75, %76 : vector<1x256xi1>, vector<1x256xf32>
    %cst_29 = arith.constant dense<0.000000e+00> : vector<1x256xf32>
    %78 = tpu.matmul %74, %8, %cst_29 {dimension_numbers = #tpu.dot_dimension_numbers<[1], [0], [0], [1], [0, 0, 1, 1], [], []>} : vector<1x64xf32>, vector<64x256xf32>, vector<1x256xf32> -> vector<1x256xf32>
    %79 = arith.addf %77, %78 : vector<1x256xf32>
    %80 = vector.extract_strided_slice %79 {offsets = [0, 0], sizes = [1, 192], strides = [1, 1]} : vector<1x256xf32> to vector<1x192xf32>
    %81 = arith.negf %80 : vector<1x192xf32>
    %82 = math.exp %81 : vector<1x192xf32>
    %cst_30 = arith.constant 1.000000e+00 : f32
    %83 = vector.broadcast %cst_30 : f32 to vector<1x192xf32>
    %84 = arith.addf %83, %82 : vector<1x192xf32>
    %85 = arith.divf %83, %84 : vector<1x192xf32>
    %86 = vector.extract_strided_slice %85 {offsets = [0, 0], sizes = [1, 64], strides = [1, 1]} : vector<1x192xf32> to vector<1x64xf32>
    %87 = vector.extract_strided_slice %85 {offsets = [0, 64], sizes = [1, 64], strides = [1, 1]} : vector<1x192xf32> to vector<1x64xf32>
    %88 = vector.extract_strided_slice %85 {offsets = [0, 128], sizes = [1, 64], strides = [1, 1]} : vector<1x192xf32> to vector<1x64xf32>
    %89 = vector.extract_strided_slice %79 {offsets = [0, 192], sizes = [1, 64], strides = [1, 1]} : vector<1x256xf32> to vector<1x64xf32>
    %90 = math.tanh %89 : vector<1x64xf32>
    %91 = arith.mulf %87, %72 : vector<1x64xf32>
    %92 = arith.mulf %86, %90 : vector<1x64xf32>
    %93 = arith.addf %91, %92 : vector<1x64xf32>
    %94 = math.tanh %93 : vector<1x64xf32>
    %95 = arith.mulf %88, %94 : vector<1x64xf32>
    %c3 = arith.constant 3 : index
    %c0_31 = arith.constant 0 : index
    %96 = vector.load %arg8[%c3, %c0_31] : memref<8x256xf32, #tpu.memory_space<vmem>>, vector<1x256xf32>
    %c4 = arith.constant 4 : index
    %c0_32 = arith.constant 0 : index
    %97 = vector.load %arg8[%c4, %c0_32] : memref<8x256xf32, #tpu.memory_space<vmem>>, vector<1x256xf32>
    %98 = arith.select %29, %96, %97 : vector<1x256xi1>, vector<1x256xf32>
    %cst_33 = arith.constant dense<0.000000e+00> : vector<1x256xf32>
    %99 = tpu.matmul %95, %8, %cst_33 {dimension_numbers = #tpu.dot_dimension_numbers<[1], [0], [0], [1], [0, 0, 1, 1], [], []>} : vector<1x64xf32>, vector<64x256xf32>, vector<1x256xf32> -> vector<1x256xf32>
    %100 = arith.addf %98, %99 : vector<1x256xf32>
    %101 = vector.extract_strided_slice %100 {offsets = [0, 0], sizes = [1, 192], strides = [1, 1]} : vector<1x256xf32> to vector<1x192xf32>
    %102 = arith.negf %101 : vector<1x192xf32>
    %103 = math.exp %102 : vector<1x192xf32>
    %cst_34 = arith.constant 1.000000e+00 : f32
    %104 = vector.broadcast %cst_34 : f32 to vector<1x192xf32>
    %105 = arith.addf %104, %103 : vector<1x192xf32>
    %106 = arith.divf %104, %105 : vector<1x192xf32>
    %107 = vector.extract_strided_slice %106 {offsets = [0, 0], sizes = [1, 64], strides = [1, 1]} : vector<1x192xf32> to vector<1x64xf32>
    %108 = vector.extract_strided_slice %106 {offsets = [0, 64], sizes = [1, 64], strides = [1, 1]} : vector<1x192xf32> to vector<1x64xf32>
    %109 = vector.extract_strided_slice %106 {offsets = [0, 128], sizes = [1, 64], strides = [1, 1]} : vector<1x192xf32> to vector<1x64xf32>
    %110 = vector.extract_strided_slice %100 {offsets = [0, 192], sizes = [1, 64], strides = [1, 1]} : vector<1x256xf32> to vector<1x64xf32>
    %111 = math.tanh %110 : vector<1x64xf32>
    %112 = arith.mulf %108, %93 : vector<1x64xf32>
    %113 = arith.mulf %107, %111 : vector<1x64xf32>
    %114 = arith.addf %112, %113 : vector<1x64xf32>
    %115 = math.tanh %114 : vector<1x64xf32>
    %116 = arith.mulf %109, %115 : vector<1x64xf32>
    %c4_35 = arith.constant 4 : index
    %c0_36 = arith.constant 0 : index
    %117 = vector.load %arg8[%c4_35, %c0_36] : memref<8x256xf32, #tpu.memory_space<vmem>>, vector<1x256xf32>
    %c3_37 = arith.constant 3 : index
    %c0_38 = arith.constant 0 : index
    %118 = vector.load %arg8[%c3_37, %c0_38] : memref<8x256xf32, #tpu.memory_space<vmem>>, vector<1x256xf32>
    %119 = arith.select %29, %117, %118 : vector<1x256xi1>, vector<1x256xf32>
    %cst_39 = arith.constant dense<0.000000e+00> : vector<1x256xf32>
    %120 = tpu.matmul %116, %8, %cst_39 {dimension_numbers = #tpu.dot_dimension_numbers<[1], [0], [0], [1], [0, 0, 1, 1], [], []>} : vector<1x64xf32>, vector<64x256xf32>, vector<1x256xf32> -> vector<1x256xf32>
    %121 = arith.addf %119, %120 : vector<1x256xf32>
    %122 = vector.extract_strided_slice %121 {offsets = [0, 0], sizes = [1, 192], strides = [1, 1]} : vector<1x256xf32> to vector<1x192xf32>
    %123 = arith.negf %122 : vector<1x192xf32>
    %124 = math.exp %123 : vector<1x192xf32>
    %cst_40 = arith.constant 1.000000e+00 : f32
    %125 = vector.broadcast %cst_40 : f32 to vector<1x192xf32>
    %126 = arith.addf %125, %124 : vector<1x192xf32>
    %127 = arith.divf %125, %126 : vector<1x192xf32>
    %128 = vector.extract_strided_slice %127 {offsets = [0, 0], sizes = [1, 64], strides = [1, 1]} : vector<1x192xf32> to vector<1x64xf32>
    %129 = vector.extract_strided_slice %127 {offsets = [0, 64], sizes = [1, 64], strides = [1, 1]} : vector<1x192xf32> to vector<1x64xf32>
    %130 = vector.extract_strided_slice %127 {offsets = [0, 128], sizes = [1, 64], strides = [1, 1]} : vector<1x192xf32> to vector<1x64xf32>
    %131 = vector.extract_strided_slice %121 {offsets = [0, 192], sizes = [1, 64], strides = [1, 1]} : vector<1x256xf32> to vector<1x64xf32>
    %132 = math.tanh %131 : vector<1x64xf32>
    %133 = arith.mulf %129, %114 : vector<1x64xf32>
    %134 = arith.mulf %128, %132 : vector<1x64xf32>
    %135 = arith.addf %133, %134 : vector<1x64xf32>
    %136 = math.tanh %135 : vector<1x64xf32>
    %137 = arith.mulf %130, %136 : vector<1x64xf32>
    %c5_41 = arith.constant 5 : index
    %c0_42 = arith.constant 0 : index
    %138 = vector.load %arg8[%c5_41, %c0_42] : memref<8x256xf32, #tpu.memory_space<vmem>>, vector<1x256xf32>
    %c2_43 = arith.constant 2 : index
    %c0_44 = arith.constant 0 : index
    %139 = vector.load %arg8[%c2_43, %c0_44] : memref<8x256xf32, #tpu.memory_space<vmem>>, vector<1x256xf32>
    %140 = arith.select %29, %138, %139 : vector<1x256xi1>, vector<1x256xf32>
    %cst_45 = arith.constant dense<0.000000e+00> : vector<1x256xf32>
    %141 = tpu.matmul %137, %8, %cst_45 {dimension_numbers = #tpu.dot_dimension_numbers<[1], [0], [0], [1], [0, 0, 1, 1], [], []>} : vector<1x64xf32>, vector<64x256xf32>, vector<1x256xf32> -> vector<1x256xf32>
    %142 = arith.addf %140, %141 : vector<1x256xf32>
    %143 = vector.extract_strided_slice %142 {offsets = [0, 0], sizes = [1, 192], strides = [1, 1]} : vector<1x256xf32> to vector<1x192xf32>
    %144 = arith.negf %143 : vector<1x192xf32>
    %145 = math.exp %144 : vector<1x192xf32>
    %cst_46 = arith.constant 1.000000e+00 : f32
    %146 = vector.broadcast %cst_46 : f32 to vector<1x192xf32>
    %147 = arith.addf %146, %145 : vector<1x192xf32>
    %148 = arith.divf %146, %147 : vector<1x192xf32>
    %149 = vector.extract_strided_slice %148 {offsets = [0, 0], sizes = [1, 64], strides = [1, 1]} : vector<1x192xf32> to vector<1x64xf32>
    %150 = vector.extract_strided_slice %148 {offsets = [0, 64], sizes = [1, 64], strides = [1, 1]} : vector<1x192xf32> to vector<1x64xf32>
    %151 = vector.extract_strided_slice %148 {offsets = [0, 128], sizes = [1, 64], strides = [1, 1]} : vector<1x192xf32> to vector<1x64xf32>
    %152 = vector.extract_strided_slice %142 {offsets = [0, 192], sizes = [1, 64], strides = [1, 1]} : vector<1x256xf32> to vector<1x64xf32>
    %153 = math.tanh %152 : vector<1x64xf32>
    %154 = arith.mulf %150, %135 : vector<1x64xf32>
    %155 = arith.mulf %149, %153 : vector<1x64xf32>
    %156 = arith.addf %154, %155 : vector<1x64xf32>
    %157 = math.tanh %156 : vector<1x64xf32>
    %158 = arith.mulf %151, %157 : vector<1x64xf32>
    %c6_47 = arith.constant 6 : index
    %c0_48 = arith.constant 0 : index
    %159 = vector.load %arg8[%c6_47, %c0_48] : memref<8x256xf32, #tpu.memory_space<vmem>>, vector<1x256xf32>
    %c1_49 = arith.constant 1 : index
    %c0_50 = arith.constant 0 : index
    %160 = vector.load %arg8[%c1_49, %c0_50] : memref<8x256xf32, #tpu.memory_space<vmem>>, vector<1x256xf32>
    %161 = arith.select %29, %159, %160 : vector<1x256xi1>, vector<1x256xf32>
    %cst_51 = arith.constant dense<0.000000e+00> : vector<1x256xf32>
    %162 = tpu.matmul %158, %8, %cst_51 {dimension_numbers = #tpu.dot_dimension_numbers<[1], [0], [0], [1], [0, 0, 1, 1], [], []>} : vector<1x64xf32>, vector<64x256xf32>, vector<1x256xf32> -> vector<1x256xf32>
    %163 = arith.addf %161, %162 : vector<1x256xf32>
    %164 = vector.extract_strided_slice %163 {offsets = [0, 0], sizes = [1, 192], strides = [1, 1]} : vector<1x256xf32> to vector<1x192xf32>
    %165 = arith.negf %164 : vector<1x192xf32>
    %166 = math.exp %165 : vector<1x192xf32>
    %cst_52 = arith.constant 1.000000e+00 : f32
    %167 = vector.broadcast %cst_52 : f32 to vector<1x192xf32>
    %168 = arith.addf %167, %166 : vector<1x192xf32>
    %169 = arith.divf %167, %168 : vector<1x192xf32>
    %170 = vector.extract_strided_slice %169 {offsets = [0, 0], sizes = [1, 64], strides = [1, 1]} : vector<1x192xf32> to vector<1x64xf32>
    %171 = vector.extract_strided_slice %169 {offsets = [0, 64], sizes = [1, 64], strides = [1, 1]} : vector<1x192xf32> to vector<1x64xf32>
    %172 = vector.extract_strided_slice %169 {offsets = [0, 128], sizes = [1, 64], strides = [1, 1]} : vector<1x192xf32> to vector<1x64xf32>
    %173 = vector.extract_strided_slice %163 {offsets = [0, 192], sizes = [1, 64], strides = [1, 1]} : vector<1x256xf32> to vector<1x64xf32>
    %174 = math.tanh %173 : vector<1x64xf32>
    %175 = arith.mulf %171, %156 : vector<1x64xf32>
    %176 = arith.mulf %170, %174 : vector<1x64xf32>
    %177 = arith.addf %175, %176 : vector<1x64xf32>
    %178 = math.tanh %177 : vector<1x64xf32>
    %179 = arith.mulf %172, %178 : vector<1x64xf32>
    %c7_53 = arith.constant 7 : index
    %c0_54 = arith.constant 0 : index
    %180 = vector.load %arg8[%c7_53, %c0_54] : memref<8x256xf32, #tpu.memory_space<vmem>>, vector<1x256xf32>
    %c0_55 = arith.constant 0 : index
    %c0_56 = arith.constant 0 : index
    %181 = vector.load %arg8[%c0_55, %c0_56] : memref<8x256xf32, #tpu.memory_space<vmem>>, vector<1x256xf32>
    %182 = arith.select %29, %180, %181 : vector<1x256xi1>, vector<1x256xf32>
    %cst_57 = arith.constant dense<0.000000e+00> : vector<1x256xf32>
    %183 = tpu.matmul %179, %8, %cst_57 {dimension_numbers = #tpu.dot_dimension_numbers<[1], [0], [0], [1], [0, 0, 1, 1], [], []>} : vector<1x64xf32>, vector<64x256xf32>, vector<1x256xf32> -> vector<1x256xf32>
    %184 = arith.addf %182, %183 : vector<1x256xf32>
    %185 = vector.extract_strided_slice %184 {offsets = [0, 0], sizes = [1, 192], strides = [1, 1]} : vector<1x256xf32> to vector<1x192xf32>
    %186 = arith.negf %185 : vector<1x192xf32>
    %187 = math.exp %186 : vector<1x192xf32>
    %cst_58 = arith.constant 1.000000e+00 : f32
    %188 = vector.broadcast %cst_58 : f32 to vector<1x192xf32>
    %189 = arith.addf %188, %187 : vector<1x192xf32>
    %190 = arith.divf %188, %189 : vector<1x192xf32>
    %191 = vector.extract_strided_slice %190 {offsets = [0, 0], sizes = [1, 64], strides = [1, 1]} : vector<1x192xf32> to vector<1x64xf32>
    %192 = vector.extract_strided_slice %190 {offsets = [0, 64], sizes = [1, 64], strides = [1, 1]} : vector<1x192xf32> to vector<1x64xf32>
    %193 = vector.extract_strided_slice %190 {offsets = [0, 128], sizes = [1, 64], strides = [1, 1]} : vector<1x192xf32> to vector<1x64xf32>
    %194 = vector.extract_strided_slice %184 {offsets = [0, 192], sizes = [1, 64], strides = [1, 1]} : vector<1x256xf32> to vector<1x64xf32>
    %195 = math.tanh %194 : vector<1x64xf32>
    %196 = arith.mulf %192, %177 : vector<1x64xf32>
    %197 = arith.mulf %191, %195 : vector<1x64xf32>
    %198 = arith.addf %196, %197 : vector<1x64xf32>
    %199 = math.tanh %198 : vector<1x64xf32>
    %200 = arith.mulf %193, %199 : vector<1x64xf32>
    %201 = arith.select %32, %53, %200 : vector<1x64xi1>, vector<1x64xf32>
    %202 = arith.select %32, %74, %179 : vector<1x64xi1>, vector<1x64xf32>
    %203 = arith.select %32, %95, %158 : vector<1x64xi1>, vector<1x64xf32>
    %204 = arith.select %32, %116, %137 : vector<1x64xi1>, vector<1x64xf32>
    %205 = arith.select %32, %137, %116 : vector<1x64xi1>, vector<1x64xf32>
    %206 = arith.select %32, %158, %95 : vector<1x64xi1>, vector<1x64xf32>
    %207 = arith.select %32, %179, %74 : vector<1x64xi1>, vector<1x64xf32>
    %208 = arith.select %32, %200, %53 : vector<1x64xi1>, vector<1x64xf32>
    %209 = tpu.concatenate %201, %202, %203, %204, %205, %206, %207, %208 in 1 : vector<1x64xf32>, vector<1x64xf32>, vector<1x64xf32>, vector<1x64xf32>, vector<1x64xf32>, vector<1x64xf32>, vector<1x64xf32>, vector<1x64xf32> -> vector<1x512xf32>
    %c0_59 = arith.constant 0 : index
    %c0_60 = arith.constant 0 : index
    %210 = vector.load %arg7[%c0_59, %c0_60] : memref<1x512xf32, #tpu.memory_space<vmem>>, vector<1x512xf32>
    tpu.vector_store %arg7[%c0_59, %c0_60], %209 {strides = array<i32>} : memref<1x512xf32, #tpu.memory_space<vmem>>, vector<1x512xf32>,
    return
  }
  func.func @transform_0(%arg0: i32) -> (i32, i32, i32) {
    %c0_i32 = arith.constant 0 : i32
    %c0_i32_0 = arith.constant 0 : i32
    %c0_i32_1 = arith.constant 0 : i32
    return %arg0, %c0_i32, %c0_i32_0 : i32, i32, i32
  }
  func.func @transform_1(%arg0: i32) -> (i32, i32) {
    %c0_i32 = arith.constant 0 : i32
    %c0_i32_0 = arith.constant 0 : i32
    %c0_i32_1 = arith.constant 0 : i32
    return %c0_i32, %c0_i32_0 : i32, i32
  }
  func.func @transform_2(%arg0: i32) -> (i32, i32) {
    %c0_i32 = arith.constant 0 : i32
    %c0_i32_0 = arith.constant 0 : i32
    %c0_i32_1 = arith.constant 0 : i32
    return %c0_i32, %c0_i32_0 : i32, i32
  }
  func.func @transform_3(%arg0: i32) -> (i32, i32) {
    %c0_i32 = arith.constant 0 : i32
    %c0_i32_0 = arith.constant 0 : i32
    %c0_i32_1 = arith.constant 0 : i32
    return %c0_i32, %c0_i32_0 : i32, i32
  }
  func.func @transform_4(%arg0: i32) -> (i32, i32) {
    %c0_i32 = arith.constant 0 : i32
    %c0_i32_0 = arith.constant 0 : i32
    return %arg0, %c0_i32 : i32, i32
  }
  func.func @transform_5(%arg0: i32) -> (i32, i32) {
    %c0_i32 = arith.constant 0 : i32
    %c0_i32_0 = arith.constant 0 : i32
    return %arg0, %c0_i32 : i32, i32
  }
  func.func @transform_6(%arg0: i32) -> (i32, i32) {
    %c0_i32 = arith.constant 0 : i32
    %c0_i32_0 = arith.constant 0 : i32
    return %arg0, %c0_i32 : i32, i32
  }
}

</mosaic_0001>

<llo_original>
// kernel: tpu_custom_call.1
$region0: #{tpu_custom_call.1}
  #allocation0 [shape = 'u32[]', space=smem, size = 0x4, offset = 0x4, fixed_abs, tag = 'smem constant byte address 0x4 - core index']
  #allocation1 [shape = 'u32[72,128]{1,0:T(1,128)}', space=vmem, size = 0x9000, scoped, tag = 'internal scratch']
  #allocation2 [shape = 'f32[8,256]{1,0:T(8,128)}', space=vmem, size = 0x2000, scoped, tag = 'scratch operand']
  %s0 = inlined_call_operand.hbm [shape: f32[1,8,16], index: 0, kind: input, shape index: {}]
  %s1 = inlined_call_operand.hbm [shape: f32[16,256], index: 1, kind: input, shape index: {}]
  %s2 = inlined_call_operand.hbm [shape: f32[64,256], index: 2, kind: input, shape index: {}]
  %s3 = inlined_call_operand.vmem [shape: f32[1,256], index: 3, kind: input, shape index: {}]
  %s4 = inlined_call_operand.vmem [shape: f32[1,64], index: 4, kind: input, shape index: {}]
  %s5 = inlined_call_operand.vmem [shape: f32[1,64], index: 5, kind: input, shape index: {}]
  %s6 = inlined_call_operand.hbm [shape: f32[1,512], index: 6, kind: output, shape index: {}]
  %s7 = sld [smem:[#allocation0]]
  $region46: #{tpu_custom_call.1} parent=0
    _
  %s9 = ssub.s32 1, %s7
  %s10 = scalar_select 0, %s9, %s7
  $region1: #{tpu_custom_call.1} parent=0
    #allocation3 [shape = 'u8[4096]{0}', space=vmem, size = 0x1000, scoped, tag = 'input window, operand 0, single buffered']
    #allocation4 [shape = 's32[1]{0}', space=sflag, size = 0x4, scoped, tag = 'scoped memory for tpu_custom_call.1']
    #allocation5 [shape = 's32[1]{0}', space=sflag, size = 0x4, scoped, tag = 'scoped memory for tpu_custom_call.1']
    #allocation6 [shape = 'u8[16384]{0}', space=vmem, size = 0x4000, scoped, tag = 'input window, operand 1, single buffered']
    #allocation7 [shape = 's32[1]{0}', space=sflag, size = 0x4, scoped, tag = 'scoped memory for tpu_custom_call.1']
    #allocation8 [shape = 'u8[65536]{0}', space=vmem, size = 0x10000, scoped, tag = 'input window, operand 2, single buffered']
    #allocation9 [shape = 'u8[2048]{0}', space=vmem, size = 0x800, scoped, tag = 'output window, operand 0, single buffered']
    %11 = vsyncpa [#allocation4], 0
    %12 = vsyncpa [#allocation7], 0
    %13 = vsyncpa [#allocation5], 0
    // Predicated region
    $region2: #{tpu_custom_call.1} parent=1 // pred_check
      _
    $region3: #{tpu_custom_call.1} parent=1 // pred_check_branch
      %15 = sbr.rel (0) target = $region5
    $region4: #{tpu_custom_call.1} parent=1 // pred_region
      %17 = vsyncadd [#allocation4], 0
      %s19 = sshll.u32 %s0, 4
      %s20 = int_to_ptr.hbm [resolvable:$true] %s19
      %s21 = sshll.u32 [#allocation3], 4
      %s22 = int_to_ptr.vmem [resolvable:$true] %s21
      %24 = dma.hbm_to_vmem [thread:$0]  %s20, 128, %s22, [#allocation4]
    $region5: #{tpu_custom_call.1} parent=1 // pred_fallthru
      _
    // Predicated region
    $region6: #{tpu_custom_call.1} parent=1 // pred_check
      _
    $region7: #{tpu_custom_call.1} parent=1 // pred_check_branch
      %26 = sbr.rel (0) target = $region9
    $region8: #{tpu_custom_call.1} parent=1 // pred_region
      %28 = vsyncadd [#allocation7], 0
      %s29 = sshll.u32 %s1, 4
      %s30 = int_to_ptr.hbm [resolvable:$true] %s29
      %s31 = sshll.u32 [#allocation6], 4
      %s32 = int_to_ptr.vmem [resolvable:$true] %s31
      %37 = dma.hbm_to_vmem [thread:$0]  %s30, 512, %s32, [#allocation7], 256, 256, 16
    $region9: #{tpu_custom_call.1} parent=1 // pred_fallthru
      _
    // Predicated region
    $region10: #{tpu_custom_call.1} parent=1 // pred_check
      _
    $region11: #{tpu_custom_call.1} parent=1 // pred_check_branch
      %39 = sbr.rel (0) target = $region13
    $region12: #{tpu_custom_call.1} parent=1 // pred_region
      %41 = vsyncadd [#allocation7], 0
      %s42 = sshll.u32 %s2, 4
      %s43 = int_to_ptr.hbm [resolvable:$true] %s42
      %s44 = sshll.u32 [#allocation8], 4
      %s45 = int_to_ptr.vmem [resolvable:$true] %s44
      %50 = dma.hbm_to_vmem [thread:$0]  %s43, 2048, %s45, [#allocation7], 256, 256, 16
    $region13: #{tpu_custom_call.1} parent=1 // pred_fallthru
      _
    // Predicated region
    $region14: #{tpu_custom_call.1} parent=1 // pred_check
      _
    $region15: #{tpu_custom_call.1} parent=1 // pred_check_branch
      %52 = sbr.rel (0) target = $region17
    $region16: #{tpu_custom_call.1} parent=1 // pred_region
      _
    $region17: #{tpu_custom_call.1} parent=1 // pred_fallthru
      _
    // Predicated region
    $region18: #{tpu_custom_call.1} parent=1 // pred_check
      _
    $region19: #{tpu_custom_call.1} parent=1 // pred_check_branch
      %54 = sbr.rel (0) target = $region21
    $region20: #{tpu_custom_call.1} parent=1 // pred_region
      _
    $region21: #{tpu_custom_call.1} parent=1 // pred_fallthru
      _
    // Predicated region
    $region22: #{tpu_custom_call.1} parent=1 // pred_check
      _
    $region23: #{tpu_custom_call.1} parent=1 // pred_check_branch
      %56 = sbr.rel (0) target = $region25
    $region24: #{tpu_custom_call.1} parent=1 // pred_region
      _
    $region25: #{tpu_custom_call.1} parent=1 // pred_fallthru
      _
    // Predicated region
    $region26: #{tpu_custom_call.1} parent=1 // pred_check
      _
    $region27: #{tpu_custom_call.1} parent=1 // pred_check_branch
      %58 = sbr.rel (0) target = $region29
    $region28: #{tpu_custom_call.1} parent=1 // pred_region
      %60 = dma.done [#allocation4], 128
    $region29: #{tpu_custom_call.1} parent=1 // pred_fallthru
      _
    // Predicated region
    $region30: #{tpu_custom_call.1} parent=1 // pred_check
      _
    $region31: #{tpu_custom_call.1} parent=1 // pred_check_branch
      %62 = sbr.rel (0) target = $region33
    $region32: #{tpu_custom_call.1} parent=1 // pred_region
      %64 = dma.done [#allocation7], 512
    $region33: #{tpu_custom_call.1} parent=1 // pred_fallthru
      _
    // Predicated region
    $region34: #{tpu_custom_call.1} parent=1 // pred_check
      _
    $region35: #{tpu_custom_call.1} parent=1 // pred_check_branch
      %66 = sbr.rel (0) target = $region37
    $region36: #{tpu_custom_call.1} parent=1 // pred_region
      %68 = dma.done [#allocation7], 2048
    $region37: #{tpu_custom_call.1} parent=1 // pred_fallthru
      _
    %v69 = vld [vmem:[#allocation3] sm:$0xff]
    %v70 = vld [vmem:[#allocation6] sm:$0xff]
    %v71 = vld [vmem:[#allocation6 + $0x8] sm:$0xff]
    %v72 = vld [vmem:[#allocation6 + $0x10] sm:$0xff]
    %v73 = vld [vmem:[#allocation6 + $0x18] sm:$0xff]
    %v74 = vld [vmem:[%s3] sm:$0x3]
    %v76 = vperm.slane %v74, 0
    %v77 = vperm.slane %v74, 1
    %vm80 = vcmask 130048
    %v82 = vsel %vm80, %v69, 0
    %84 = vmatpush.msra.mxu0 0.0
    %85 = vmatpush.msra.mxu0 0.0
    %86 = vmatpush.msra.mxu0 0.0
    %87 = vmatpush.msra.mxu0 0.0
    %88 = vmatpush.msra.mxu0 0.0
    %89 = vmatpush.msra.mxu0 0.0
    %90 = vmatpush.msra.mxu0 0.0
    %91 = vmatpush.msra.mxu0 0.0
    %92 = vmatpush.msra.mxu0 0.0
    %93 = vmatpush.msra.mxu0 0.0
    %94 = vmatpush.msra.mxu0 0.0
    %95 = vmatpush.msra.mxu0 0.0
    %96 = vmatpush.msra.mxu0 0.0
    %97 = vmatpush.msra.mxu0 0.0
    %98 = vmatpush.msra.mxu0 %v72
    %99 = vmatpush.msra.mxu0 %v70
    %100 = vmatmul.f32.gmra.mxu0 %v82
    %v101 = vpop.f32.mrf.mxu0
    %v102 = vadd.f32 %v76, %v101
    %103 = vdwg.mxu0
    %104 = vmatpush.msra.mxu0 0.0
    %105 = vmatpush.msra.mxu0 0.0
    %106 = vmatpush.msra.mxu0 0.0
    %107 = vmatpush.msra.mxu0 0.0
    %108 = vmatpush.msra.mxu0 0.0
    %109 = vmatpush.msra.mxu0 0.0
    %110 = vmatpush.msra.mxu0 0.0
    %111 = vmatpush.msra.mxu0 0.0
    %112 = vmatpush.msra.mxu0 0.0
    %113 = vmatpush.msra.mxu0 0.0
    %114 = vmatpush.msra.mxu0 0.0
    %115 = vmatpush.msra.mxu0 0.0
    %116 = vmatpush.msra.mxu0 0.0
    %117 = vmatpush.msra.mxu0 0.0
    %118 = vmatpush.msra.mxu0 %v73
    %119 = vmatpush.msra.mxu0 %v71
    %120 = vmatmul.f32.gmra.mxu0 %v82
    %v121 = vpop.f32.mrf.mxu0
    %v122 = vadd.f32 %v77, %v121
    %123 = vdwg.mxu0
    %124 = vst [vmem:[#allocation2] sm:$0xff] %v102
    %125 = vst [vmem:[#allocation2 + $0x8] sm:$0xff] %v122
    %v126 = vld [vmem:[#allocation8] sm:$0xff]
    %v127 = vld [vmem:[#allocation8 + $0x8] sm:$0xff]
    %v128 = vld [vmem:[#allocation8 + $0x10] sm:$0xff]
    %v129 = vld [vmem:[#allocation8 + $0x18] sm:$0xff]
    %v130 = vld [vmem:[#allocation8 + $0x20] sm:$0xff]
    %v131 = vld [vmem:[#allocation8 + $0x28] sm:$0xff]
    %v132 = vld [vmem:[#allocation8 + $0x30] sm:$0xff]
    %v133 = vld [vmem:[#allocation8 + $0x38] sm:$0xff]
    %v134 = vld [vmem:[#allocation8 + $0x40] sm:$0xff]
    %v135 = vld [vmem:[#allocation8 + $0x48] sm:$0xff]
    %v136 = vld [vmem:[#allocation8 + $0x50] sm:$0xff]
    %v137 = vld [vmem:[#allocation8 + $0x58] sm:$0xff]
    %v138 = vld [vmem:[#allocation8 + $0x60] sm:$0xff]
    %v139 = vld [vmem:[#allocation8 + $0x68] sm:$0xff]
    %v140 = vld [vmem:[#allocation8 + $0x70] sm:$0xff]
    %v141 = vld [vmem:[#allocation8 + $0x78] sm:$0xff]
    %v142 = vld [vmem:[%s4] sm:$0x1]
    %v143 = vld [vmem:[%s5] sm:$0x1]
    %v144 = vlaneseq
    %v145 = vand.u32 %v144, 127
    %v146 = vadd.s32 %v145, 128
    %vm147 = vcmp.lt.s32.totalorder %v145, 0
    %v148 = vsub.s32 0, %v145
    %v149 = vsel %vm147, %v148, %v145
    %v150 = vshrl.u32 %v149, 6
    %v151 = vand.u32 %v149, 63
    %v152 = vsub.s32 0, %v151
    %v153 = vsel %vm147, %v152, %v151
    %vm154 = vcmp.lt.s32.totalorder %v146, 0
    %v155 = vsub.s32 0, %v146
    %v156 = vsel %vm154, %v155, %v146
    %v157 = vshrl.u32 %v156, 6
    %v158 = vand.u32 %v156, 63
    %v159 = vsub.s32 0, %v158
    %v160 = vsel %vm154, %v159, %v158
    %vm161 = vcmp.ne.s32.totalorder %v153, 0
    %vm162 = vcmp.ne.s32.totalorder %v160, 0
    %vm163 = vcmp.lt.s32.totalorder %v153, 0
    %vm164 = vcmp.lt.s32.totalorder %v160, 0
    %vm165 = vmand %vm163, %vm161
    %vm166 = vmand %vm164, %vm162
    %v167 = vadd.s32 %v153, 64
    %v168 = vadd.s32 %v160, 64
    %v169 = vsel %vm165, %v167, %v153
    %v170 = vsel %vm166, %v168, %v160
    %vm171 = vcmp.lt.s32.totalorder %v169, 32
    %vm172 = vcmp.lt.s32.totalorder %v170, 32
    %vm173 = vcmp.lt.s32.totalorder %v145, 32
    %v174 = vld [vmem:[#allocation2] ss:$8 sm:$0x3]
    %s175 = scalar_lea.vmem [#allocation2], 7
    %v176 = vld [vmem:[%s175] ss:$8 sm:$0x3]
    %v178 = vperm.slane %v174, 0
    %v179 = vperm.slane %v174, 1
    %v183 = vperm.slane %v176, 0
    %v184 = vperm.slane %v176, 1
    %v187 = vsel %vm171, %v178, %v183
    %v188 = vsel %vm172, %v179, %v184
    %vm189 = vcmask 523264
    %v191 = vsel %vm189, %v142, 0
    %193 = vmatpush.msra.mxu0 0.0
    %194 = vmatpush.msra.mxu0 0.0
    %195 = vmatpush.msra.mxu0 0.0
    %196 = vmatpush.msra.mxu0 0.0
    %197 = vmatpush.msra.mxu0 0.0
    %198 = vmatpush.msra.mxu0 0.0
    %199 = vmatpush.msra.mxu0 0.0
    %200 = vmatpush.msra.mxu0 0.0
    %201 = vmatpush.msra.mxu0 %v140
    %202 = vmatpush.msra.mxu0 %v138
    %203 = vmatpush.msra.mxu0 %v136
    %204 = vmatpush.msra.mxu0 %v134
    %205 = vmatpush.msra.mxu0 %v132
    %206 = vmatpush.msra.mxu0 %v130
    %207 = vmatpush.msra.mxu0 %v128
    %208 = vmatpush.msra.mxu0 %v126
    %209 = vmatmul.f32.gmra.mxu0 %v191
    %v210 = vpop.f32.mrf.mxu0
    %v211 = vadd.f32 0.0, %v210
    %212 = vdwg.mxu0
    %213 = vmatpush.msra.mxu0 0.0
    %214 = vmatpush.msra.mxu0 0.0
    %215 = vmatpush.msra.mxu0 0.0
    %216 = vmatpush.msra.mxu0 0.0
    %217 = vmatpush.msra.mxu0 0.0
    %218 = vmatpush.msra.mxu0 0.0
    %219 = vmatpush.msra.mxu0 0.0
    %220 = vmatpush.msra.mxu0 0.0
    %221 = vmatpush.msra.mxu0 %v141
    %222 = vmatpush.msra.mxu0 %v139
    %223 = vmatpush.msra.mxu0 %v137
    %224 = vmatpush.msra.mxu0 %v135
    %225 = vmatpush.msra.mxu0 %v133
    %226 = vmatpush.msra.mxu0 %v131
    %227 = vmatpush.msra.mxu0 %v129
    %228 = vmatpush.msra.mxu0 %v127
    %229 = vmatmul.f32.gmra.mxu0 %v191
    %v230 = vpop.f32.mrf.mxu0
    %v231 = vadd.f32 0.0, %v230
    %232 = vdwg.mxu0
    %v233 = vadd.f32 %v187, %v211
    %v234 = vadd.f32 %v188, %v231
    %v235 = vxor.u32 %v233, 2147483648
    %v236 = vxor.u32 %v234, 2147483648
    %v237 = vmul.f32 %v235, 1.442695
    %v238 = vpow.pop %v237
    %v239 = vmul.f32 %v236, 1.442695
    %v240 = vpow.pop %v239
    %v241 = vadd.f32 %v238, 1.0
    %v242 = vadd.f32 %v240, 1.0
    %v243 = vrcp.pop %v241
    %v244 = vmul.f32 %v241, %v243
    %v245 = vsub.f32 1.0, %v244
    %v246 = vmul.f32 %v243, %v245
    %v247 = vadd.f32 %v243, %v246
    %vm248 = vweird.f32 %v241
    %vm249 = vweird.f32 %v243
    %vm250 = vmor %vm248, %vm249
    %v251 = vsel %vm250, %v243, %v247
    %v252 = vand.u32 2147483647, %v241
    %vm253 = vcmp.eq.f32.partialorder %v252, 8.507059e+37
    %v254 = vand.u32 %v241, 2147483648
    %v255 = vor.u32 1.1754944e-38, %v254
    %v256 = vsel %vm253, %v255, %v251
    %v257 = vmul.f32 1.0, %v256
    %v258 = vrcp.pop %v242
    %v259 = vmul.f32 %v242, %v258
    %v260 = vsub.f32 1.0, %v259
    %v261 = vmul.f32 %v258, %v260
    %v262 = vadd.f32 %v258, %v261
    %vm263 = vweird.f32 %v242
    %vm264 = vweird.f32 %v258
    %vm265 = vmor %vm263, %vm264
    %v266 = vsel %vm265, %v258, %v262
    %v267 = vand.u32 2147483647, %v242
    %vm268 = vcmp.eq.f32.partialorder %v267, 8.507059e+37
    %v269 = vand.u32 %v242, 2147483648
    %v270 = vor.u32 1.1754944e-38, %v269
    %v271 = vsel %vm268, %v270, %v266
    %v272 = vmul.f32 1.0, %v271
    %v273 = vtanh.pop %v234
    %v275 = vperm.slane %v143, 0
    %276 = vrot.lane.b32.xlu0 %v275, 64
    %v277 = vpop.permute.xlu0 %276
    %v279 = vmul.f32 %v257, %v277
    %281 = vrot.lane.b32.xlu0 %v273, 64
    %v282 = vpop.permute.xlu0 %281
    %v284 = vmul.f32 %v257, %v282
    %286 = vrot.lane.b32.xlu0 %v284, 64
    %v287 = vpop.permute.xlu0 %286
    %v289 = vadd.f32 %v279, %v287
    %v290 = vtanh.pop %v289
    %292 = vrot.lane.b32.xlu0 %v290, 64
    %v293 = vpop.permute.xlu0 %292
    %v295 = vmul.f32 %v272, %v293
    %s296 = scalar_lea.vmem [#allocation2], 1
    %v297 = vld [vmem:[%s296] ss:$8 sm:$0x3]
    %s298 = scalar_lea.vmem [#allocation2], 6
    %v299 = vld [vmem:[%s298] ss:$8 sm:$0x3]
    %v301 = vperm.slane %v297, 0
    %v302 = vperm.slane %v297, 1
    %v306 = vperm.slane %v299, 0
    %v307 = vperm.slane %v299, 1
    %v310 = vsel %vm171, %v301, %v306
    %v311 = vsel %vm172, %v302, %v307
    %v313 = vsel %vm189, %v295, 0
    %315 = vmatpush.msra.mxu0 0.0
    %316 = vmatpush.msra.mxu0 0.0
    %317 = vmatpush.msra.mxu0 0.0
    %318 = vmatpush.msra.mxu0 0.0
    %319 = vmatpush.msra.mxu0 0.0
    %320 = vmatpush.msra.mxu0 0.0
    %321 = vmatpush.msra.mxu0 0.0
    %322 = vmatpush.msra.mxu0 0.0
    %323 = vmatpush.msra.mxu0 %v140
    %324 = vmatpush.msra.mxu0 %v138
    %325 = vmatpush.msra.mxu0 %v136
    %326 = vmatpush.msra.mxu0 %v134
    %327 = vmatpush.msra.mxu0 %v132
    %328 = vmatpush.msra.mxu0 %v130
    %329 = vmatpush.msra.mxu0 %v128
    %330 = vmatpush.msra.mxu0 %v126
    %331 = vmatmul.f32.gmra.mxu0 %v313
    %v332 = vpop.f32.mrf.mxu0
    %v333 = vadd.f32 0.0, %v332
    %334 = vdwg.mxu0
    %335 = vmatpush.msra.mxu0 0.0
    %336 = vmatpush.msra.mxu0 0.0
    %337 = vmatpush.msra.mxu0 0.0
    %338 = vmatpush.msra.mxu0 0.0
    %339 = vmatpush.msra.mxu0 0.0
    %340 = vmatpush.msra.mxu0 0.0
    %341 = vmatpush.msra.mxu0 0.0
    %342 = vmatpush.msra.mxu0 0.0
    %343 = vmatpush.msra.mxu0 %v141
    %344 = vmatpush.msra.mxu0 %v139
    %345 = vmatpush.msra.mxu0 %v137
    %346 = vmatpush.msra.mxu0 %v135
    %347 = vmatpush.msra.mxu0 %v133
    %348 = vmatpush.msra.mxu0 %v131
    %349 = vmatpush.msra.mxu0 %v129
    %350 = vmatpush.msra.mxu0 %v127
    %351 = vmatmul.f32.gmra.mxu0 %v313
    %v352 = vpop.f32.mrf.mxu0
    %v353 = vadd.f32 0.0, %v352
    %354 = vdwg.mxu0
    %v355 = vadd.f32 %v310, %v333
    %v356 = vadd.f32 %v311, %v353
    %v357 = vxor.u32 %v355, 2147483648
    %v358 = vxor.u32 %v356, 2147483648
    %v359 = vmul.f32 %v357, 1.442695
    %v360 = vpow.pop %v359
    %v361 = vmul.f32 %v358, 1.442695
    %v362 = vpow.pop %v361
    %v363 = vadd.f32 %v360, 1.0
    %v364 = vadd.f32 %v362, 1.0
    %v365 = vrcp.pop %v363
    %v366 = vmul.f32 %v363, %v365
    %v367 = vsub.f32 1.0, %v366
    %v368 = vmul.f32 %v365, %v367
    %v369 = vadd.f32 %v365, %v368
    %vm370 = vweird.f32 %v363
    %vm371 = vweird.f32 %v365
    %vm372 = vmor %vm370, %vm371
    %v373 = vsel %vm372, %v365, %v369
    %v374 = vand.u32 2147483647, %v363
    %vm375 = vcmp.eq.f32.partialorder %v374, 8.507059e+37
    %v376 = vand.u32 %v363, 2147483648
    %v377 = vor.u32 1.1754944e-38, %v376
    %v378 = vsel %vm375, %v377, %v373
    %v379 = vmul.f32 1.0, %v378
    %v380 = vrcp.pop %v364
    %v381 = vmul.f32 %v364, %v380
    %v382 = vsub.f32 1.0, %v381
    %v383 = vmul.f32 %v380, %v382
    %v384 = vadd.f32 %v380, %v383
    %vm385 = vweird.f32 %v364
    %vm386 = vweird.f32 %v380
    %vm387 = vmor %vm385, %vm386
    %v388 = vsel %vm387, %v380, %v384
    %v389 = vand.u32 2147483647, %v364
    %vm390 = vcmp.eq.f32.partialorder %v389, 8.507059e+37
    %v391 = vand.u32 %v364, 2147483648
    %v392 = vor.u32 1.1754944e-38, %v391
    %v393 = vsel %vm390, %v392, %v388
    %v394 = vmul.f32 1.0, %v393
    %v395 = vtanh.pop %v356
    %v396 = vmul.f32 %v379, %v289
    %398 = vrot.lane.b32.xlu0 %v395, 64
    %v399 = vpop.permute.xlu0 %398
    %v401 = vmul.f32 %v379, %v399
    %403 = vrot.lane.b32.xlu0 %v401, 64
    %v404 = vpop.permute.xlu0 %403
    %v406 = vadd.f32 %v396, %v404
    %v407 = vtanh.pop %v406
    %409 = vrot.lane.b32.xlu0 %v407, 64
    %v410 = vpop.permute.xlu0 %409
    %v412 = vmul.f32 %v394, %v410
    %s413 = scalar_lea.vmem [#allocation2], 2
    %v414 = vld [vmem:[%s413] ss:$8 sm:$0x3]
    %s415 = scalar_lea.vmem [#allocation2], 5
    %v416 = vld [vmem:[%s415] ss:$8 sm:$0x3]
    %v418 = vperm.slane %v414, 0
    %v419 = vperm.slane %v414, 1
    %v423 = vperm.slane %v416, 0
    %v424 = vperm.slane %v416, 1
    %v427 = vsel %vm171, %v418, %v423
    %v428 = vsel %vm172, %v419, %v424
    %v430 = vsel %vm189, %v412, 0
    %432 = vmatpush.msra.mxu0 0.0
    %433 = vmatpush.msra.mxu0 0.0
    %434 = vmatpush.msra.mxu0 0.0
    %435 = vmatpush.msra.mxu0 0.0
    %436 = vmatpush.msra.mxu0 0.0
    %437 = vmatpush.msra.mxu0 0.0
    %438 = vmatpush.msra.mxu0 0.0
    %439 = vmatpush.msra.mxu0 0.0
    %440 = vmatpush.msra.mxu0 %v140
    %441 = vmatpush.msra.mxu0 %v138
    %442 = vmatpush.msra.mxu0 %v136
    %443 = vmatpush.msra.mxu0 %v134
    %444 = vmatpush.msra.mxu0 %v132
    %445 = vmatpush.msra.mxu0 %v130
    %446 = vmatpush.msra.mxu0 %v128
    %447 = vmatpush.msra.mxu0 %v126
    %448 = vmatmul.f32.gmra.mxu0 %v430
    %v449 = vpop.f32.mrf.mxu0
    %v450 = vadd.f32 0.0, %v449
    %451 = vdwg.mxu0
    %452 = vmatpush.msra.mxu0 0.0
    %453 = vmatpush.msra.mxu0 0.0
    %454 = vmatpush.msra.mxu0 0.0
    %455 = vmatpush.msra.mxu0 0.0
    %456 = vmatpush.msra.mxu0 0.0
    %457 = vmatpush.msra.mxu0 0.0
    %458 = vmatpush.msra.mxu0 0.0
    %459 = vmatpush.msra.mxu0 0.0
    %460 = vmatpush.msra.mxu0 %v141
    %461 = vmatpush.msra.mxu0 %v139
    %462 = vmatpush.msra.mxu0 %v137
    %463 = vmatpush.msra.mxu0 %v135
    %464 = vmatpush.msra.mxu0 %v133
    %465 = vmatpush.msra.mxu0 %v131
    %466 = vmatpush.msra.mxu0 %v129
    %467 = vmatpush.msra.mxu0 %v127
    %468 = vmatmul.f32.gmra.mxu0 %v430
    %v469 = vpop.f32.mrf.mxu0
    %v470 = vadd.f32 0.0, %v469
    %471 = vdwg.mxu0
    %v472 = vadd.f32 %v427, %v450
    %v473 = vadd.f32 %v428, %v470
    %v474 = vxor.u32 %v472, 2147483648
    %v475 = vxor.u32 %v473, 2147483648
    %v476 = vmul.f32 %v474, 1.442695
    %v477 = vpow.pop %v476
    %v478 = vmul.f32 %v475, 1.442695
    %v479 = vpow.pop %v478
    %v480 = vadd.f32 %v477, 1.0
    %v481 = vadd.f32 %v479, 1.0
    %v482 = vrcp.pop %v480
    %v483 = vmul.f32 %v480, %v482
    %v484 = vsub.f32 1.0, %v483
    %v485 = vmul.f32 %v482, %v484
    %v486 = vadd.f32 %v482, %v485
    %vm487 = vweird.f32 %v480
    %vm488 = vweird.f32 %v482
    %vm489 = vmor %vm487, %vm488
    %v490 = vsel %vm489, %v482, %v486
    %v491 = vand.u32 2147483647, %v480
    %vm492 = vcmp.eq.f32.partialorder %v491, 8.507059e+37
    %v493 = vand.u32 %v480, 2147483648
    %v494 = vor.u32 1.1754944e-38, %v493
    %v495 = vsel %vm492, %v494, %v490
    %v496 = vmul.f32 1.0, %v495
    %v497 = vrcp.pop %v481
    %v498 = vmul.f32 %v481, %v497
    %v499 = vsub.f32 1.0, %v498
    %v500 = vmul.f32 %v497, %v499
    %v501 = vadd.f32 %v497, %v500
    %vm502 = vweird.f32 %v481
    %vm503 = vweird.f32 %v497
    %vm504 = vmor %vm502, %vm503
    %v505 = vsel %vm504, %v497, %v501
    %v506 = vand.u32 2147483647, %v481
    %vm507 = vcmp.eq.f32.partialorder %v506, 8.507059e+37
    %v508 = vand.u32 %v481, 2147483648
    %v509 = vor.u32 1.1754944e-38, %v508
    %v510 = vsel %vm507, %v509, %v505
    %v511 = vmul.f32 1.0, %v510
    %v512 = vtanh.pop %v473
    %v513 = vmul.f32 %v496, %v406
    %515 = vrot.lane.b32.xlu0 %v512, 64
    %v516 = vpop.permute.xlu0 %515
    %v518 = vmul.f32 %v496, %v516
    %520 = vrot.lane.b32.xlu0 %v518, 64
    %v521 = vpop.permute.xlu0 %520
    %v523 = vadd.f32 %v513, %v521
    %v524 = vtanh.pop %v523
    %526 = vrot.lane.b32.xlu0 %v524, 64
    %v527 = vpop.permute.xlu0 %526
    %v529 = vmul.f32 %v511, %v527
    %s530 = scalar_lea.vmem [#allocation2], 3
    %v531 = vld [vmem:[%s530] ss:$8 sm:$0x3]
    %s532 = scalar_lea.vmem [#allocation2], 4
    %v533 = vld [vmem:[%s532] ss:$8 sm:$0x3]
    %v535 = vperm.slane %v531, 0
    %v536 = vperm.slane %v531, 1
    %v540 = vperm.slane %v533, 0
    %v541 = vperm.slane %v533, 1
    %v544 = vsel %vm171, %v535, %v540
    %v545 = vsel %vm172, %v536, %v541
    %v547 = vsel %vm189, %v529, 0
    %549 = vmatpush.msra.mxu0 0.0
    %550 = vmatpush.msra.mxu0 0.0
    %551 = vmatpush.msra.mxu0 0.0
    %552 = vmatpush.msra.mxu0 0.0
    %553 = vmatpush.msra.mxu0 0.0
    %554 = vmatpush.msra.mxu0 0.0
    %555 = vmatpush.msra.mxu0 0.0
    %556 = vmatpush.msra.mxu0 0.0
    %557 = vmatpush.msra.mxu0 %v140
    %558 = vmatpush.msra.mxu0 %v138
    %559 = vmatpush.msra.mxu0 %v136
    %560 = vmatpush.msra.mxu0 %v134
    %561 = vmatpush.msra.mxu0 %v132
    %562 = vmatpush.msra.mxu0 %v130
    %563 = vmatpush.msra.mxu0 %v128
    %564 = vmatpush.msra.mxu0 %v126
    %565 = vmatmul.f32.gmra.mxu0 %v547
    %v566 = vpop.f32.mrf.mxu0
    %v567 = vadd.f32 0.0, %v566
    %568 = vdwg.mxu0
    %569 = vmatpush.msra.mxu0 0.0
    %570 = vmatpush.msra.mxu0 0.0
    %571 = vmatpush.msra.mxu0 0.0
    %572 = vmatpush.msra.mxu0 0.0
    %573 = vmatpush.msra.mxu0 0.0
    %574 = vmatpush.msra.mxu0 0.0
    %575 = vmatpush.msra.mxu0 0.0
    %576 = vmatpush.msra.mxu0 0.0
    %577 = vmatpush.msra.mxu0 %v141
    %578 = vmatpush.msra.mxu0 %v139
    %579 = vmatpush.msra.mxu0 %v137
    %580 = vmatpush.msra.mxu0 %v135
    %581 = vmatpush.msra.mxu0 %v133
    %582 = vmatpush.msra.mxu0 %v131
    %583 = vmatpush.msra.mxu0 %v129
    %584 = vmatpush.msra.mxu0 %v127
    %585 = vmatmul.f32.gmra.mxu0 %v547
    %v586 = vpop.f32.mrf.mxu0
    %v587 = vadd.f32 0.0, %v586
    %588 = vdwg.mxu0
    %v589 = vadd.f32 %v544, %v567
    %v590 = vadd.f32 %v545, %v587
    %v591 = vxor.u32 %v589, 2147483648
    %v592 = vxor.u32 %v590, 2147483648
    %v593 = vmul.f32 %v591, 1.442695
    %v594 = vpow.pop %v593
    %v595 = vmul.f32 %v592, 1.442695
    %v596 = vpow.pop %v595
    %v597 = vadd.f32 %v594, 1.0
    %v598 = vadd.f32 %v596, 1.0
    %v599 = vrcp.pop %v597
    %v600 = vmul.f32 %v597, %v599
    %v601 = vsub.f32 1.0, %v600
    %v602 = vmul.f32 %v599, %v601
    %v603 = vadd.f32 %v599, %v602
    %vm604 = vweird.f32 %v597
    %vm605 = vweird.f32 %v599
    %vm606 = vmor %vm604, %vm605
    %v607 = vsel %vm606, %v599, %v603
    %v608 = vand.u32 2147483647, %v597
    %vm609 = vcmp.eq.f32.partialorder %v608, 8.507059e+37
    %v610 = vand.u32 %v597, 2147483648
    %v611 = vor.u32 1.1754944e-38, %v610
    %v612 = vsel %vm609, %v611, %v607
    %v613 = vmul.f32 1.0, %v612
    %v614 = vrcp.pop %v598
    %v615 = vmul.f32 %v598, %v614
    %v616 = vsub.f32 1.0, %v615
    %v617 = vmul.f32 %v614, %v616
    %v618 = vadd.f32 %v614, %v617
    %vm619 = vweird.f32 %v598
    %vm620 = vweird.f32 %v614
    %vm621 = vmor %vm619, %vm620
    %v622 = vsel %vm621, %v614, %v618
    %v623 = vand.u32 2147483647, %v598
    %vm624 = vcmp.eq.f32.partialorder %v623, 8.507059e+37
    %v625 = vand.u32 %v598, 2147483648
    %v626 = vor.u32 1.1754944e-38, %v625
    %v627 = vsel %vm624, %v626, %v622
    %v628 = vmul.f32 1.0, %v627
    %v629 = vtanh.pop %v590
    %v630 = vmul.f32 %v613, %v523
    %632 = vrot.lane.b32.xlu0 %v629, 64
    %v633 = vpop.permute.xlu0 %632
    %v635 = vmul.f32 %v613, %v633
    %637 = vrot.lane.b32.xlu0 %v635, 64
    %v638 = vpop.permute.xlu0 %637
    %v640 = vadd.f32 %v630, %v638
    %v641 = vtanh.pop %v640
    %643 = vrot.lane.b32.xlu0 %v641, 64
    %v644 = vpop.permute.xlu0 %643
    %v646 = vmul.f32 %v628, %v644
    %v647 = vsel %vm171, %v540, %v535
    %v648 = vsel %vm172, %v541, %v536
    %v650 = vsel %vm189, %v646, 0
    %652 = vmatpush.msra.mxu0 0.0
    %653 = vmatpush.msra.mxu0 0.0
    %654 = vmatpush.msra.mxu0 0.0
    %655 = vmatpush.msra.mxu0 0.0
    %656 = vmatpush.msra.mxu0 0.0
    %657 = vmatpush.msra.mxu0 0.0
    %658 = vmatpush.msra.mxu0 0.0
    %659 = vmatpush.msra.mxu0 0.0
    %660 = vmatpush.msra.mxu0 %v140
    %661 = vmatpush.msra.mxu0 %v138
    %662 = vmatpush.msra.mxu0 %v136
    %663 = vmatpush.msra.mxu0 %v134
    %664 = vmatpush.msra.mxu0 %v132
    %665 = vmatpush.msra.mxu0 %v130
    %666 = vmatpush.msra.mxu0 %v128
    %667 = vmatpush.msra.mxu0 %v126
    %668 = vmatmul.f32.gmra.mxu0 %v650
    %v669 = vpop.f32.mrf.mxu0
    %v670 = vadd.f32 0.0, %v669
    %671 = vdwg.mxu0
    %672 = vmatpush.msra.mxu0 0.0
    %673 = vmatpush.msra.mxu0 0.0
    %674 = vmatpush.msra.mxu0 0.0
    %675 = vmatpush.msra.mxu0 0.0
    %676 = vmatpush.msra.mxu0 0.0
    %677 = vmatpush.msra.mxu0 0.0
    %678 = vmatpush.msra.mxu0 0.0
    %679 = vmatpush.msra.mxu0 0.0
    %680 = vmatpush.msra.mxu0 %v141
    %681 = vmatpush.msra.mxu0 %v139
    %682 = vmatpush.msra.mxu0 %v137
    %683 = vmatpush.msra.mxu0 %v135
    %684 = vmatpush.msra.mxu0 %v133
    %685 = vmatpush.msra.mxu0 %v131
    %686 = vmatpush.msra.mxu0 %v129
    %687 = vmatpush.msra.mxu0 %v127
    %688 = vmatmul.f32.gmra.mxu0 %v650
    %v689 = vpop.f32.mrf.mxu0
    %v690 = vadd.f32 0.0, %v689
    %691 = vdwg.mxu0
    %v692 = vadd.f32 %v647, %v670
    %v693 = vadd.f32 %v648, %v690
    %v694 = vxor.u32 %v692, 2147483648
    %v695 = vxor.u32 %v693, 2147483648
    %v696 = vmul.f32 %v694, 1.442695
    %v697 = vpow.pop %v696
    %v698 = vmul.f32 %v695, 1.442695
    %v699 = vpow.pop %v698
    %v700 = vadd.f32 %v697, 1.0
    %v701 = vadd.f32 %v699, 1.0
    %v702 = vrcp.pop %v700
    %v703 = vmul.f32 %v700, %v702
    %v704 = vsub.f32 1.0, %v703
    %v705 = vmul.f32 %v702, %v704
    %v706 = vadd.f32 %v702, %v705
    %vm707 = vweird.f32 %v700
    %vm708 = vweird.f32 %v702
    %vm709 = vmor %vm707, %vm708
    %v710 = vsel %vm709, %v702, %v706
    %v711 = vand.u32 2147483647, %v700
    %vm712 = vcmp.eq.f32.partialorder %v711, 8.507059e+37
    %v713 = vand.u32 %v700, 2147483648
    %v714 = vor.u32 1.1754944e-38, %v713
    %v715 = vsel %vm712, %v714, %v710
    %v716 = vmul.f32 1.0, %v715
    %v717 = vrcp.pop %v701
    %v718 = vmul.f32 %v701, %v717
    %v719 = vsub.f32 1.0, %v718
    %v720 = vmul.f32 %v717, %v719
    %v721 = vadd.f32 %v717, %v720
    %vm722 = vweird.f32 %v701
    %vm723 = vweird.f32 %v717
    %vm724 = vmor %vm722, %vm723
    %v725 = vsel %vm724, %v717, %v721
    %v726 = vand.u32 2147483647, %v701
    %vm727 = vcmp.eq.f32.partialorder %v726, 8.507059e+37
    %v728 = vand.u32 %v701, 2147483648
    %v729 = vor.u32 1.1754944e-38, %v728
    %v730 = vsel %vm727, %v729, %v725
    %v731 = vmul.f32 1.0, %v730
    %v732 = vtanh.pop %v693
    %v733 = vmul.f32 %v716, %v640
    %735 = vrot.lane.b32.xlu0 %v732, 64
    %v736 = vpop.permute.xlu0 %735
    %v738 = vmul.f32 %v716, %v736
    %740 = vrot.lane.b32.xlu0 %v738, 64
    %v741 = vpop.permute.xlu0 %740
    %v743 = vadd.f32 %v733, %v741
    %v744 = vtanh.pop %v743
    %746 = vrot.lane.b32.xlu0 %v744, 64
    %v747 = vpop.permute.xlu0 %746
    %v749 = vmul.f32 %v731, %v747
    %v750 = vsel %vm171, %v423, %v418
    %v751 = vsel %vm172, %v424, %v419
    %v753 = vsel %vm189, %v749, 0
    %755 = vmatpush.msra.mxu0 0.0
    %756 = vmatpush.msra.mxu0 0.0
    %757 = vmatpush.msra.mxu0 0.0
    %758 = vmatpush.msra.mxu0 0.0
    %759 = vmatpush.msra.mxu0 0.0
    %760 = vmatpush.msra.mxu0 0.0
    %761 = vmatpush.msra.mxu0 0.0
    %762 = vmatpush.msra.mxu0 0.0
    %763 = vmatpush.msra.mxu0 %v140
    %764 = vmatpush.msra.mxu0 %v138
    %765 = vmatpush.msra.mxu0 %v136
    %766 = vmatpush.msra.mxu0 %v134
    %767 = vmatpush.msra.mxu0 %v132
    %768 = vmatpush.msra.mxu0 %v130
    %769 = vmatpush.msra.mxu0 %v128
    %770 = vmatpush.msra.mxu0 %v126
    %771 = vmatmul.f32.gmra.mxu0 %v753
    %v772 = vpop.f32.mrf.mxu0
    %v773 = vadd.f32 0.0, %v772
    %774 = vdwg.mxu0
    %775 = vmatpush.msra.mxu0 0.0
    %776 = vmatpush.msra.mxu0 0.0
    %777 = vmatpush.msra.mxu0 0.0
    %778 = vmatpush.msra.mxu0 0.0
    %779 = vmatpush.msra.mxu0 0.0
    %780 = vmatpush.msra.mxu0 0.0
    %781 = vmatpush.msra.mxu0 0.0
    %782 = vmatpush.msra.mxu0 0.0
    %783 = vmatpush.msra.mxu0 %v141
    %784 = vmatpush.msra.mxu0 %v139
    %785 = vmatpush.msra.mxu0 %v137
    %786 = vmatpush.msra.mxu0 %v135
    %787 = vmatpush.msra.mxu0 %v133
    %788 = vmatpush.msra.mxu0 %v131
    %789 = vmatpush.msra.mxu0 %v129
    %790 = vmatpush.msra.mxu0 %v127
    %791 = vmatmul.f32.gmra.mxu0 %v753
    %v792 = vpop.f32.mrf.mxu0
    %v793 = vadd.f32 0.0, %v792
    %794 = vdwg.mxu0
    %v795 = vadd.f32 %v750, %v773
    %v796 = vadd.f32 %v751, %v793
    %v797 = vxor.u32 %v795, 2147483648
    %v798 = vxor.u32 %v796, 2147483648
    %v799 = vmul.f32 %v797, 1.442695
    %v800 = vpow.pop %v799
    %v801 = vmul.f32 %v798, 1.442695
    %v802 = vpow.pop %v801
    %v803 = vadd.f32 %v800, 1.0
    %v804 = vadd.f32 %v802, 1.0
    %v805 = vrcp.pop %v803
    %v806 = vmul.f32 %v803, %v805
    %v807 = vsub.f32 1.0, %v806
    %v808 = vmul.f32 %v805, %v807
    %v809 = vadd.f32 %v805, %v808
    %vm810 = vweird.f32 %v803
    %vm811 = vweird.f32 %v805
    %vm812 = vmor %vm810, %vm811
    %v813 = vsel %vm812, %v805, %v809
    %v814 = vand.u32 2147483647, %v803
    %vm815 = vcmp.eq.f32.partialorder %v814, 8.507059e+37
    %v816 = vand.u32 %v803, 2147483648
    %v817 = vor.u32 1.1754944e-38, %v816
    %v818 = vsel %vm815, %v817, %v813
    %v819 = vmul.f32 1.0, %v818
    %v820 = vrcp.pop %v804
    %v821 = vmul.f32 %v804, %v820
    %v822 = vsub.f32 1.0, %v821
    %v823 = vmul.f32 %v820, %v822
    %v824 = vadd.f32 %v820, %v823
    %vm825 = vweird.f32 %v804
    %vm826 = vweird.f32 %v820
    %vm827 = vmor %vm825, %vm826
    %v828 = vsel %vm827, %v820, %v824
    %v829 = vand.u32 2147483647, %v804
    %vm830 = vcmp.eq.f32.partialorder %v829, 8.507059e+37
    %v831 = vand.u32 %v804, 2147483648
    %v832 = vor.u32 1.1754944e-38, %v831
    %v833 = vsel %vm830, %v832, %v828
    %v834 = vmul.f32 1.0, %v833
    %v835 = vtanh.pop %v796
    %v836 = vmul.f32 %v819, %v743
    %838 = vrot.lane.b32.xlu0 %v835, 64
    %v839 = vpop.permute.xlu0 %838
    %v841 = vmul.f32 %v819, %v839
    %843 = vrot.lane.b32.xlu0 %v841, 64
    %v844 = vpop.permute.xlu0 %843
    %v846 = vadd.f32 %v836, %v844
    %v847 = vtanh.pop %v846
    %849 = vrot.lane.b32.xlu0 %v847, 64
    %v850 = vpop.permute.xlu0 %849
    %v852 = vmul.f32 %v834, %v850
    %v853 = vsel %vm171, %v306, %v301
    %v854 = vsel %vm172, %v307, %v302
    %v856 = vsel %vm189, %v852, 0
    %858 = vmatpush.msra.mxu0 0.0
    %859 = vmatpush.msra.mxu0 0.0
    %860 = vmatpush.msra.mxu0 0.0
    %861 = vmatpush.msra.mxu0 0.0
    %862 = vmatpush.msra.mxu0 0.0
    %863 = vmatpush.msra.mxu0 0.0
    %864 = vmatpush.msra.mxu0 0.0
    %865 = vmatpush.msra.mxu0 0.0
    %866 = vmatpush.msra.mxu0 %v140
    %867 = vmatpush.msra.mxu0 %v138
    %868 = vmatpush.msra.mxu0 %v136
    %869 = vmatpush.msra.mxu0 %v134
    %870 = vmatpush.msra.mxu0 %v132
    %871 = vmatpush.msra.mxu0 %v130
    %872 = vmatpush.msra.mxu0 %v128
    %873 = vmatpush.msra.mxu0 %v126
    %874 = vmatmul.f32.gmra.mxu0 %v856
    %v875 = vpop.f32.mrf.mxu0
    %v876 = vadd.f32 0.0, %v875
    %877 = vdwg.mxu0
    %878 = vmatpush.msra.mxu0 0.0
    %879 = vmatpush.msra.mxu0 0.0
    %880 = vmatpush.msra.mxu0 0.0
    %881 = vmatpush.msra.mxu0 0.0
    %882 = vmatpush.msra.mxu0 0.0
    %883 = vmatpush.msra.mxu0 0.0
    %884 = vmatpush.msra.mxu0 0.0
    %885 = vmatpush.msra.mxu0 0.0
    %886 = vmatpush.msra.mxu0 %v141
    %887 = vmatpush.msra.mxu0 %v139
    %888 = vmatpush.msra.mxu0 %v137
    %889 = vmatpush.msra.mxu0 %v135
    %890 = vmatpush.msra.mxu0 %v133
    %891 = vmatpush.msra.mxu0 %v131
    %892 = vmatpush.msra.mxu0 %v129
    %893 = vmatpush.msra.mxu0 %v127
    %894 = vmatmul.f32.gmra.mxu0 %v856
    %v895 = vpop.f32.mrf.mxu0
    %v896 = vadd.f32 0.0, %v895
    %897 = vdwg.mxu0
    %v898 = vadd.f32 %v853, %v876
    %v899 = vadd.f32 %v854, %v896
    %v900 = vxor.u32 %v898, 2147483648
    %v901 = vxor.u32 %v899, 2147483648
    %v902 = vmul.f32 %v900, 1.442695
    %v903 = vpow.pop %v902
    %v904 = vmul.f32 %v901, 1.442695
    %v905 = vpow.pop %v904
    %v906 = vadd.f32 %v903, 1.0
    %v907 = vadd.f32 %v905, 1.0
    %v908 = vrcp.pop %v906
    %v909 = vmul.f32 %v906, %v908
    %v910 = vsub.f32 1.0, %v909
    %v911 = vmul.f32 %v908, %v910
    %v912 = vadd.f32 %v908, %v911
    %vm913 = vweird.f32 %v906
    %vm914 = vweird.f32 %v908
    %vm915 = vmor %vm913, %vm914
    %v916 = vsel %vm915, %v908, %v912
    %v917 = vand.u32 2147483647, %v906
    %vm918 = vcmp.eq.f32.partialorder %v917, 8.507059e+37
    %v919 = vand.u32 %v906, 2147483648
    %v920 = vor.u32 1.1754944e-38, %v919
    %v921 = vsel %vm918, %v920, %v916
    %v922 = vmul.f32 1.0, %v921
    %v923 = vrcp.pop %v907
    %v924 = vmul.f32 %v907, %v923
    %v925 = vsub.f32 1.0, %v924
    %v926 = vmul.f32 %v923, %v925
    %v927 = vadd.f32 %v923, %v926
    %vm928 = vweird.f32 %v907
    %vm929 = vweird.f32 %v923
    %vm930 = vmor %vm928, %vm929
    %v931 = vsel %vm930, %v923, %v927
    %v932 = vand.u32 2147483647, %v907
    %vm933 = vcmp.eq.f32.partialorder %v932, 8.507059e+37
    %v934 = vand.u32 %v907, 2147483648
    %v935 = vor.u32 1.1754944e-38, %v934
    %v936 = vsel %vm933, %v935, %v931
    %v937 = vmul.f32 1.0, %v936
    %v938 = vtanh.pop %v899
    %v939 = vmul.f32 %v922, %v846
    %941 = vrot.lane.b32.xlu0 %v938, 64
    %v942 = vpop.permute.xlu0 %941
    %v944 = vmul.f32 %v922, %v942
    %946 = vrot.lane.b32.xlu0 %v944, 64
    %v947 = vpop.permute.xlu0 %946
    %v949 = vadd.f32 %v939, %v947
    %v950 = vtanh.pop %v949
    %952 = vrot.lane.b32.xlu0 %v950, 64
    %v953 = vpop.permute.xlu0 %952
    %v955 = vmul.f32 %v937, %v953
    %v956 = vsel %vm171, %v183, %v178
    %v957 = vsel %vm172, %v184, %v179
    %v959 = vsel %vm189, %v955, 0
    %961 = vmatpush.msra.mxu0 0.0
    %962 = vmatpush.msra.mxu0 0.0
    %963 = vmatpush.msra.mxu0 0.0
    %964 = vmatpush.msra.mxu0 0.0
    %965 = vmatpush.msra.mxu0 0.0
    %966 = vmatpush.msra.mxu0 0.0
    %967 = vmatpush.msra.mxu0 0.0
    %968 = vmatpush.msra.mxu0 0.0
    %969 = vmatpush.msra.mxu0 %v140
    %970 = vmatpush.msra.mxu0 %v138
    %971 = vmatpush.msra.mxu0 %v136
    %972 = vmatpush.msra.mxu0 %v134
    %973 = vmatpush.msra.mxu0 %v132
    %974 = vmatpush.msra.mxu0 %v130
    %975 = vmatpush.msra.mxu0 %v128
    %976 = vmatpush.msra.mxu0 %v126
    %977 = vmatmul.f32.gmra.mxu0 %v959
    %v978 = vpop.f32.mrf.mxu0
    %v979 = vadd.f32 0.0, %v978
    %980 = vdwg.mxu0
    %981 = vmatpush.msra.mxu0 0.0
    %982 = vmatpush.msra.mxu0 0.0
    %983 = vmatpush.msra.mxu0 0.0
    %984 = vmatpush.msra.mxu0 0.0
    %985 = vmatpush.msra.mxu0 0.0
    %986 = vmatpush.msra.mxu0 0.0
    %987 = vmatpush.msra.mxu0 0.0
    %988 = vmatpush.msra.mxu0 0.0
    %989 = vmatpush.msra.mxu0 %v141
    %990 = vmatpush.msra.mxu0 %v139
    %991 = vmatpush.msra.mxu0 %v137
    %992 = vmatpush.msra.mxu0 %v135
    %993 = vmatpush.msra.mxu0 %v133
    %994 = vmatpush.msra.mxu0 %v131
    %995 = vmatpush.msra.mxu0 %v129
    %996 = vmatpush.msra.mxu0 %v127
    %997 = vmatmul.f32.gmra.mxu0 %v959
    %v998 = vpop.f32.mrf.mxu0
    %v999 = vadd.f32 0.0, %v998
    %1000 = vdwg.mxu0
    %v1001 = vadd.f32 %v956, %v979
    %v1002 = vadd.f32 %v957, %v999
    %v1003 = vxor.u32 %v1001, 2147483648
    %v1004 = vxor.u32 %v1002, 2147483648
    %v1005 = vmul.f32 %v1003, 1.442695
    %v1006 = vpow.pop %v1005
    %v1007 = vmul.f32 %v1004, 1.442695
    %v1008 = vpow.pop %v1007
    %v1009 = vadd.f32 %v1006, 1.0
    %v1010 = vadd.f32 %v1008, 1.0
    %v1011 = vrcp.pop %v1009
    %v1012 = vmul.f32 %v1009, %v1011
    %v1013 = vsub.f32 1.0, %v1012
    %v1014 = vmul.f32 %v1011, %v1013
    %v1015 = vadd.f32 %v1011, %v1014
    %vm1016 = vweird.f32 %v1009
    %vm1017 = vweird.f32 %v1011
    %vm1018 = vmor %vm1016, %vm1017
    %v1019 = vsel %vm1018, %v1011, %v1015
    %v1020 = vand.u32 2147483647, %v1009
    %vm1021 = vcmp.eq.f32.partialorder %v1020, 8.507059e+37
    %v1022 = vand.u32 %v1009, 2147483648
    %v1023 = vor.u32 1.1754944e-38, %v1022
    %v1024 = vsel %vm1021, %v1023, %v1019
    %v1025 = vmul.f32 1.0, %v1024
    %v1026 = vrcp.pop %v1010
    %v1027 = vmul.f32 %v1010, %v1026
    %v1028 = vsub.f32 1.0, %v1027
    %v1029 = vmul.f32 %v1026, %v1028
    %v1030 = vadd.f32 %v1026, %v1029
    %vm1031 = vweird.f32 %v1010
    %vm1032 = vweird.f32 %v1026
    %vm1033 = vmor %vm1031, %vm1032
    %v1034 = vsel %vm1033, %v1026, %v1030
    %v1035 = vand.u32 2147483647, %v1010
    %vm1036 = vcmp.eq.f32.partialorder %v1035, 8.507059e+37
    %v1037 = vand.u32 %v1010, 2147483648
    %v1038 = vor.u32 1.1754944e-38, %v1037
    %v1039 = vsel %vm1036, %v1038, %v1034
    %v1040 = vmul.f32 1.0, %v1039
    %v1041 = vtanh.pop %v1002
    %v1042 = vmul.f32 %v1025, %v949
    %1044 = vrot.lane.b32.xlu0 %v1041, 64
    %v1045 = vpop.permute.xlu0 %1044
    %v1047 = vmul.f32 %v1025, %v1045
    %1049 = vrot.lane.b32.xlu0 %v1047, 64
    %v1050 = vpop.permute.xlu0 %1049
    %v1052 = vadd.f32 %v1042, %v1050
    %v1053 = vtanh.pop %v1052
    %1055 = vrot.lane.b32.xlu0 %v1053, 64
    %v1056 = vpop.permute.xlu0 %1055
    %v1058 = vmul.f32 %v1040, %v1056
    %v1059 = vsel %vm173, %v295, %v1058
    %v1060 = vsel %vm173, %v412, %v955
    %v1061 = vsel %vm173, %v529, %v852
    %v1062 = vsel %vm173, %v646, %v749
    %v1063 = vsel %vm173, %v749, %v646
    %v1064 = vsel %vm173, %v852, %v529
    %v1065 = vsel %vm173, %v955, %v412
    %v1066 = vsel %vm173, %v1058, %v295
    %1068 = vrot.lane.b32.xlu0 %v1060, 64
    %v1069 = vpop.permute.xlu0 %1068
    %1072 = vrot.lane.b32.xlu0 %v1062, 64
    %v1073 = vpop.permute.xlu0 %1072
    %1076 = vrot.lane.b32.xlu0 %v1064, 64
    %v1077 = vpop.permute.xlu0 %1076
    %1080 = vrot.lane.b32.xlu0 %v1066, 64
    %v1081 = vpop.permute.xlu0 %1080
    %v1083 = vsel %vm189, %v1059, %v1069
    %v1084 = vsel %vm189, %v1061, %v1073
    %v1085 = vsel %vm189, %v1063, %v1077
    %v1086 = vsel %vm189, %v1065, %v1081
    %v1091 = vrot.slane %v1084, 7
    %v1092 = vrot.slane %v1085, 6
    %v1093 = vrot.slane %v1086, 5
    %vm1094 = vcmask 1040384
    %v1095 = vsel %vm1094, %v1083, %v1091
    %vm1096 = vcmask 1042434
    %v1097 = vsel %vm1096, %v1092, %v1093
    %vm1098 = vcmask 1041408
    %v1099 = vsel %vm1098, %v1095, %v1097
    %v1101 = vlaneseq
    %vm1102 = vcmp.ge.s32.totalorder %v1101, 0
    %vm1103 = vcmp.lt.s32.totalorder %v1101, 512
    %vm1104 = vmand %vm1102, %vm1103
    %1105 = vst.msk [vmem:[#allocation9] sm:$0xf] %vm1104, %v1099
    // Predicated region
    $region38: #{tpu_custom_call.1} parent=1 // pred_check
      _
    $region39: #{tpu_custom_call.1} parent=1 // pred_check_branch
      %1107 = sbr.rel (0) target = $region41
    $region40: #{tpu_custom_call.1} parent=1 // pred_region
      %1109 = vsyncadd [#allocation5], 0
      %s1111 = sshll.u32 [#allocation9], 4
      %s1112 = int_to_ptr.vmem [resolvable:$true] %s1111
      %s1113 = sshll.u32 %s6, 4
      %s1114 = int_to_ptr.hbm [resolvable:$true] %s1113
      %1116 = dma.vmem_to_hbm [thread:$0]  %s1112, 64, %s1114, [#allocation5]
    $region41: #{tpu_custom_call.1} parent=1 // pred_fallthru
      _
    // Predicated region
    $region42: #{tpu_custom_call.1} parent=1 // pred_check
      _
    $region43: #{tpu_custom_call.1} parent=1 // pred_check_branch
      %1118 = sbr.rel (0) target = $region45
    $region44: #{tpu_custom_call.1} parent=1 // pred_region
      %1120 = dma.done [#allocation5], 64
    $region45: #{tpu_custom_call.1} parent=1 // pred_fallthru
      _
    %1121 = vsyncpa [#allocation4], 1
    %1122 = vsyncpa [#allocation7], 1
    %1123 = vsyncpa [#allocation5], 1

</llo_original>
